<compile_context>
chip_gen: v5e
topology: v5e:2x2
jax: 0.10.0
libtpu: 0.0.40
codegen_flags: <defaults>
</compile_context>

<pallas_src>
import functools
import math

import jax
import jax.numpy as jnp
from jax.experimental import pallas as pl
from jax.experimental.pallas import tpu as pltpu


# ----------------------------- kernel helpers -----------------------------

def _layer_norm(x, gamma, beta, eps=1e-5):
    # PyTorch nn.LayerNorm: biased variance, eps=1e-5, f32 throughout.
    mu = jnp.mean(x, axis=-1, keepdims=True)
    var = jnp.mean((x - mu) ** 2, axis=-1, keepdims=True)
    return (x - mu) * jax.lax.rsqrt(var + eps) * gamma + beta


# --------------------------------- kernel ---------------------------------

def decoder_block_kernel(tgt_ref, mem_ref, mask_ref,
                         w_sa_qkv_ref, b_sa_qkv_ref, w_sa_o_ref, b_sa_o_ref,
                         w_ca_q_ref, b_ca_q_ref, w_ca_kv_ref, b_ca_kv_ref,
                         w_ca_o_ref, b_ca_o_ref,
                         w1_ref, b1_ref, w2_ref, b2_ref,
                         ln_g_ref, ln_b_ref,
                         out_ref, *, num_heads):
    T, W = tgt_ref.shape            # one batch element per grid step
    S = mem_ref.shape[0]
    H = num_heads
    dh = W // H
    bf16 = jnp.bfloat16

    x_tgt = tgt_ref[...]            # (T, W) f32
    x_mem = mem_ref[...]            # (S, W) f32

    # Additive attention mask, computed once (not per head): 0 keep, -1e30 drop.
    # TODO(synk): fully-masked rows (impossible with a causal mask) would give
    # uniform weights rather than PyTorch's NaN/zero behavior.
    mask_bias = jnp.where(mask_ref[...] > 0, jnp.float32(0.0), jnp.float32(-1e30))

    def to_heads(x2d, L, groups):
        # (L, groups*H*dh) -> (groups*H, L, dh): a single reshape + transpose
        # per tensor (replaces the old 3*H lane sub-slices + leading concat).
        # Relayout in f32, then cast to bf16 (MXU-native) for the matmuls.
        return x2d.reshape(L, groups * H, dh).swapaxes(0, 1).astype(bf16)

    def attention(qh, kh, vh, attn_bias):
        # Head-batched attention: leading batch dim = heads, bf16 MXU inputs,
        # f32 accumulation.  qh is already 1/sqrt(dh)-scaled (folded weights).
        Lq = qh.shape[1]
        s = jnp.einsum('htd,hsd->hts', qh, kh,
                       preferred_element_type=jnp.float32)       # (H, Lq, Lkv)
        if attn_bias is not None:
            s = s + attn_bias
        m = jnp.max(s, axis=-1, keepdims=True)
        p = jnp.exp(s - m)
        l = jnp.sum(p, axis=-1, keepdims=True)
        o = jnp.einsum('hts,hsd->htd', p.astype(bf16), vh,
                       preferred_element_type=jnp.float32)       # (H, Lq, dh)
        # Deferred softmax normalization on the small head outputs; exact
        # reciprocal still runs on the EUP, off the VALU path.
        o = o * pl.reciprocal(l, approx=False)
        # Merge heads with a single relayout -> (Lq, H*dh); the output
        # projection is then ONE full-depth matmul (no per-head K=dh loop).
        return o.swapaxes(0, 1).reshape(Lq, H * dh)

    def project(x2d, w_ref, b_ref):
        # bf16 x bf16 matmul, f32 accumulation, f32 bias add.
        return jnp.dot(x2d.astype(bf16), w_ref[...],
                       preferred_element_type=jnp.float32) + b_ref[...]

    # ---- self-attention + residual + norm1 ----
    qkv = project(x_tgt, w_sa_qkv_ref, b_sa_qkv_ref)             # (T, 3W) f32
    qkv_h = to_heads(qkv, T, 3)                                  # (3H, T, dh) bf16
    sa = project(attention(qkv_h[:H], qkv_h[H:2 * H], qkv_h[2 * H:], mask_bias),
                 w_sa_o_ref, b_sa_o_ref)                         # (T, W) f32
    x = _layer_norm(x_tgt + sa, ln_g_ref[0:1, :], ln_b_ref[0:1, :])

    # ---- cross-attention (query = x, key/value = memory) + residual + norm2 ----
    q = project(x, w_ca_q_ref, b_ca_q_ref)                       # (T, W)  f32
    kv = project(x_mem, w_ca_kv_ref, b_ca_kv_ref)                # (S, 2W) f32
    qh = to_heads(q, T, 1)                                       # (H,  T, dh)
    kvh = to_heads(kv, S, 2)                                     # (2H, S, dh)
    ca = project(attention(qh, kvh[:H], kvh[H:], None),
                 w_ca_o_ref, b_ca_o_ref)
    x = _layer_norm(x + ca, ln_g_ref[1:2, :], ln_b_ref[1:2, :])

    # ---- position-wise feedforward + residual + norm3 ----
    h1 = jnp.maximum(project(x, w1_ref, b1_ref), 0.0)            # (T, F) relu
    mlp = project(h1, w2_ref, b2_ref)                            # (T, W)
    out_ref[...] = _layer_norm(x + mlp, ln_g_ref[2:3, :], ln_b_ref[2:3, :])
    # TODO(synk): dropout / dropout1..3 are identity (eval mode); train-mode
    # dropout (pltpu.prng_*) is not implemented in the kernel.


# -------------------------------- wrapper ----------------------------------

def transformer_decoder_block(tgt, memory, tgt_mask, params, num_heads):
    """Eval-mode forward pass of TransformerDecoderBlock via one Pallas call."""
    N, T, W = tgt.shape
    S = memory.shape[1]
    dh = W // num_heads
    scale = jnp.float32(1.0 / math.sqrt(dh))
    bf16 = jnp.bfloat16

    wa, ba = params["w_attn"], params["b_attn"]
    # One-time weight fusion/cast outside the kernel (would be folded at
    # parameter-load time in a real model):
    #  * Q/K/V fused into one (W, 3W) projection (K/V fused for cross-attn),
    #  * the 1/sqrt(dh) attention scale folded into the Q weights/biases,
    #  * matmul weights pre-cast to bf16 (MXU-native dtype, halves weight DMA);
    #    biases and LayerNorm params stay f32.
    w_sa_qkv = jnp.concatenate([wa[0] * scale, wa[1], wa[2]], axis=1).astype(bf16)
    b_sa_qkv = jnp.concatenate([ba[0] * scale, ba[1], ba[2]])[None, :]
    w_ca_kv = jnp.concatenate([wa[5], wa[6]], axis=1).astype(bf16)
    b_ca_kv = jnp.concatenate([ba[5], ba[6]])[None, :]

    args = (tgt, memory, tgt_mask,
            w_sa_qkv, b_sa_qkv, wa[3].astype(bf16), ba[3][None, :],
            (wa[4] * scale).astype(bf16), (ba[4] * scale)[None, :],
            w_ca_kv, b_ca_kv, wa[7].astype(bf16), ba[7][None, :],
            params["w1"].astype(bf16), params["b1"],
            params["w2"].astype(bf16), params["b2"],
            params["ln_g"], params["ln_b"])

    def resident_spec(a):
        # Whole array, same block index every grid step -> fetched once and
        # kept VMEM-resident across the batch grid (no re-DMA).
        zeros = (0,) * a.ndim
        return pl.BlockSpec(a.shape, lambda b: zeros)

    in_specs = [pl.BlockSpec((None, T, W), lambda b: (b, 0, 0)),   # tgt -> (T, W)
                pl.BlockSpec((None, S, W), lambda b: (b, 0, 0))]   # mem -> (S, W)
    in_specs += [resident_spec(a) for a in args[2:]]

    kernel = functools.partial(decoder_block_kernel, num_heads=num_heads)
    # Grid over the batch, marked "parallel": on v7x the two TensorCores each
    # take half the batch; on v5e/v6e (single TC) the extra grid step costs
    # only ~0.35 us.  At realistic T/S/W/F add a T-tile axis, flash-style K/V
    # tiling and FFN F-tiling, raise vmem_limit_bytes to 64-100 MiB on
    # v5e/v6e and keep it <=~48 MiB on v7x (64 MiB physical VMEM), and keep
    # feature dims lane-dense (multiples of 128).
    return pl.pallas_call(
        kernel,
        out_shape=jax.ShapeDtypeStruct((N, T, W), jnp.float32),
        grid=(N,),
        in_specs=in_specs,
        out_specs=pl.BlockSpec((None, T, W), lambda b: (b, 0, 0)),
        compiler_params=pltpu.CompilerParams(
            dimension_semantics=("parallel",),
            vmem_limit_bytes=32 * 1024 * 1024),
    )(*args)


# ---------------------------- pure-JAX reference ----------------------------

def reference(tgt, memory, mask, p, num_heads):
    def ln(x, g, b):
        mu = x.mean(-1, keepdims=True)
        var = ((x - mu) ** 2).mean(-1, keepdims=True)
        return (x - mu) / jnp.sqrt(var + 1e-5) * g + b

    def mha(xq, xkv, wq, bq, wk, bk, wv, bv, wp, bp, m=None):
        N, T, Wd = xq.shape
        S = xkv.shape[1]
        dh = Wd // num_heads
        q = (xq @ wq + bq).reshape(N, T, num_heads, dh).transpose(0, 2, 1, 3)
        k = (xkv @ wk + bk).reshape(N, S, num_heads, dh).transpose(0, 2, 1, 3)
        v = (xkv @ wv + bv).reshape(N, S, num_heads, dh).transpose(0, 2, 1, 3)
        s = (q @ k.transpose(0, 1, 3, 2)) / jnp.sqrt(jnp.float32(dh))
        if m is not None:
            s = jnp.where(m > 0, s, jnp.float32(-1e30))
        a = jax.nn.softmax(s, axis=-1)
        o = (a @ v).transpose(0, 2, 1, 3).reshape(N, T, Wd)
        return o @ wp + bp

    wa, ba = p["w_attn"], p["b_attn"]
    sa = mha(tgt, tgt, wa[0], ba[0], wa[1], ba[1], wa[2], ba[2], wa[3], ba[3], mask)
    x = ln(tgt + sa, p["ln_g"][0], p["ln_b"][0])
    ca = mha(x, memory, wa[4], ba[4], wa[5], ba[5], wa[6], ba[6], wa[7], ba[7])
    x = ln(x + ca, p["ln_g"][1], p["ln_b"][1])
    h = jax.nn.relu(x @ p["w1"] + p["b1"])
    mlp = h @ p["w2"] + p["b2"]
    return ln(x + mlp, p["ln_g"][2], p["ln_b"][2])


# ----------------------------------- main -----------------------------------

if __name__ == "__main__":
    # batch, tgt len, mem len, input_dim, heads, dim_feedforward
    N, T, S, W, H, F = 2, 8, 8, 32, 4, 64

    key = jax.random.PRNGKey(0)
    ks = jax.random.split(key, 12)

    params = {
        "w_attn": (jax.random.normal(ks[0], (8, W, W), jnp.float32) * 0.05),
        "b_attn": (jax.random.normal(ks[1], (8, W), jnp.float32) * 0.05),
        "w1": (jax.random.normal(ks[2], (W, F), jnp.float32) * 0.05),
        "b1": (jax.random.normal(ks[3], (1, F), jnp.float32) * 0.05),
        "w2": (jax.random.normal(ks[4], (F, W), jnp.float32) * 0.05),
        "b2": (jax.random.normal(ks[5], (1, W), jnp.float32) * 0.05),
        "ln_g": jnp.ones((3, W), jnp.float32)
                + 0.01 * jax.random.normal(ks[6], (3, W), jnp.float32),
        "ln_b": 0.01 * jax.random.normal(ks[7], (3, W), jnp.float32),
    }

    tgt = jax.random.normal(ks[8], (N, T, W), jnp.float32)
    memory = jax.random.normal(ks[9], (N, S, W), jnp.float32)
    tgt_mask = jnp.tril(jnp.ones((T, T), jnp.float32))   # causal mask (1 = keep)

    out = transformer_decoder_block(tgt, memory, tgt_mask, params, num_heads=H)
    out = jax.block_until_ready(out)

    ref = reference(tgt, memory, tgt_mask, params, num_heads=H)
    assert out.shape == (N, T, W)
    # Tolerance covers bf16 MXU inputs (accumulation is f32); softmax,
    # residuals and LayerNorms are exact f32.
    err = float(jnp.max(jnp.abs(out - ref)))
    assert err < 2e-2, f"kernel does not match reference (max abs err {err})"

    print("KERNEL_OK")
</pallas_src>

<mosaic_0001>
module attributes {stable_mosaic.version = 11 : i64} {
  func.func @decoder_block_kernel(%arg0: i32, %arg1: memref<1x8x32xf32, #tpu.memory_space<vmem>>, %arg2: memref<1x8x32xf32, #tpu.memory_space<vmem>>, %arg3: memref<8x8xf32, #tpu.memory_space<vmem>>, %arg4: memref<32x96xbf16, #tpu.memory_space<vmem>>, %arg5: memref<1x96xf32, #tpu.memory_space<vmem>>, %arg6: memref<32x32xbf16, #tpu.memory_space<vmem>>, %arg7: memref<1x32xf32, #tpu.memory_space<vmem>>, %arg8: memref<32x32xbf16, #tpu.memory_space<vmem>>, %arg9: memref<1x32xf32, #tpu.memory_space<vmem>>, %arg10: memref<32x64xbf16, #tpu.memory_space<vmem>>, %arg11: memref<1x64xf32, #tpu.memory_space<vmem>>, %arg12: memref<32x32xbf16, #tpu.memory_space<vmem>>, %arg13: memref<1x32xf32, #tpu.memory_space<vmem>>, %arg14: memref<32x64xbf16, #tpu.memory_space<vmem>>, %arg15: memref<1x64xf32, #tpu.memory_space<vmem>>, %arg16: memref<64x32xbf16, #tpu.memory_space<vmem>>, %arg17: memref<1x32xf32, #tpu.memory_space<vmem>>, %arg18: memref<3x32xf32, #tpu.memory_space<vmem>>, %arg19: memref<3x32xf32, #tpu.memory_space<vmem>>, %arg20: memref<1x8x32xf32, #tpu.memory_space<vmem>>) attributes {dimension_semantics = [#tpu.dimension_semantics<parallel>], iteration_bounds = array<i64: 2>, scalar_prefetch = 0 : i64, scratch_operands = 0 : i64, tpu.core_type = #tpu.core_type<tc>, window_params = [{transform_indices = @transform_0, window_bounds = array<i64: 1, 8, 32>}, {transform_indices = @transform_1, window_bounds = array<i64: 1, 8, 32>}, {pipeline_mode = #tpu.pipeline_mode<synchronous>, transform_indices = @transform_2, window_bounds = array<i64: 8, 8>}, {pipeline_mode = #tpu.pipeline_mode<synchronous>, transform_indices = @transform_3, window_bounds = array<i64: 32, 96>}, {pipeline_mode = #tpu.pipeline_mode<synchronous>, transform_indices = @transform_4, window_bounds = array<i64: 1, 96>}, {pipeline_mode = #tpu.pipeline_mode<synchronous>, transform_indices = @transform_5, window_bounds = array<i64: 32, 32>}, {pipeline_mode = #tpu.pipeline_mode<synchronous>, transform_indices = @transform_6, window_bounds = array<i64: 1, 32>}, {pipeline_mode = #tpu.pipeline_mode<synchronous>, transform_indices = @transform_7, window_bounds = array<i64: 32, 32>}, {pipeline_mode = #tpu.pipeline_mode<synchronous>, transform_indices = @transform_8, window_bounds = array<i64: 1, 32>}, {pipeline_mode = #tpu.pipeline_mode<synchronous>, transform_indices = @transform_9, window_bounds = array<i64: 32, 64>}, {pipeline_mode = #tpu.pipeline_mode<synchronous>, transform_indices = @transform_10, window_bounds = array<i64: 1, 64>}, {pipeline_mode = #tpu.pipeline_mode<synchronous>, transform_indices = @transform_11, window_bounds = array<i64: 32, 32>}, {pipeline_mode = #tpu.pipeline_mode<synchronous>, transform_indices = @transform_12, window_bounds = array<i64: 1, 32>}, {pipeline_mode = #tpu.pipeline_mode<synchronous>, transform_indices = @transform_13, window_bounds = array<i64: 32, 64>}, {pipeline_mode = #tpu.pipeline_mode<synchronous>, transform_indices = @transform_14, window_bounds = array<i64: 1, 64>}, {pipeline_mode = #tpu.pipeline_mode<synchronous>, transform_indices = @transform_15, window_bounds = array<i64: 64, 32>}, {pipeline_mode = #tpu.pipeline_mode<synchronous>, transform_indices = @transform_16, window_bounds = array<i64: 1, 32>}, {pipeline_mode = #tpu.pipeline_mode<synchronous>, transform_indices = @transform_17, window_bounds = array<i64: 3, 32>}, {pipeline_mode = #tpu.pipeline_mode<synchronous>, transform_indices = @transform_18, window_bounds = array<i64: 3, 32>}, {transform_indices = @transform_19, window_bounds = array<i64: 1, 8, 32>}]} {
    %c0 = arith.constant 0 : index
    %c0_0 = arith.constant 0 : index
    %c0_1 = arith.constant 0 : index
    %0 = vector.load %arg1[%c0, %c0_0, %c0_1] : memref<1x8x32xf32, #tpu.memory_space<vmem>>, vector<1x8x32xf32>
    %1 = vector.shape_cast %0 : vector<1x8x32xf32> to vector<8x32xf32>
    %c0_2 = arith.constant 0 : index
    %c0_3 = arith.constant 0 : index
    %c0_4 = arith.constant 0 : index
    %2 = vector.load %arg2[%c0_2, %c0_3, %c0_4] : memref<1x8x32xf32, #tpu.memory_space<vmem>>, vector<1x8x32xf32>
    %3 = vector.shape_cast %2 : vector<1x8x32xf32> to vector<8x32xf32>
    %c0_5 = arith.constant 0 : index
    %c0_6 = arith.constant 0 : index
    %4 = vector.load %arg3[%c0_5, %c0_6] : memref<8x8xf32, #tpu.memory_space<vmem>>, vector<8x8xf32>
    %cst = arith.constant 0.000000e+00 : f32
    %5 = vector.broadcast %cst : f32 to vector<8x8xf32>
    %6 = arith.cmpf ogt, %4, %5 : vector<8x8xf32>
    %cst_7 = arith.constant 0.000000e+00 : f32
    %cst_8 = arith.constant -1.000000e+30 : f32
    %7 = vector.broadcast %cst_7 : f32 to vector<8x8xf32>
    %8 = vector.broadcast %cst_8 : f32 to vector<8x8xf32>
    %9 = arith.select %6, %7, %8 : vector<8x8xi1>, vector<8x8xf32>
    %10 = arith.truncf %1 : vector<8x32xf32> to vector<8x32xbf16>
    %c0_9 = arith.constant 0 : index
    %c0_10 = arith.constant 0 : index
    %11 = vector.load %arg4[%c0_9, %c0_10] : memref<32x96xbf16, #tpu.memory_space<vmem>>, vector<32x96xbf16>
    %cst_11 = arith.constant dense<0.000000e+00> : vector<8x96xf32>
    %12 = tpu.matmul %10, %11, %cst_11 {dimension_numbers = #tpu.dot_dimension_numbers<[1], [0], [0], [1], [0, 0, 1, 1], [], []>} : vector<8x32xbf16>, vector<32x96xbf16>, vector<8x96xf32> -> vector<8x96xf32>
    %c0_12 = arith.constant 0 : index
    %c0_13 = arith.constant 0 : index
    %13 = vector.load %arg5[%c0_12, %c0_13] : memref<1x96xf32, #tpu.memory_space<vmem>>, vector<1x96xf32>
    %14 = vector.broadcast %13 : vector<1x96xf32> to vector<8x96xf32>
    %15 = arith.addf %12, %14 : vector<8x96xf32>
    %16 = vector.shape_cast %15 : vector<8x96xf32> to vector<8x12x8xf32>
    %17 = tpu.transpose %16, [1, 0, 2] : vector<8x12x8xf32> -> vector<12x8x8xf32>
    %18 = arith.truncf %17 : vector<12x8x8xf32> to vector<12x8x8xbf16>
    %19 = vector.extract_strided_slice %18 {offsets = [0, 0, 0], sizes = [4, 8, 8], strides = [1, 1, 1]} : vector<12x8x8xbf16> to vector<4x8x8xbf16>
    %20 = vector.extract_strided_slice %18 {offsets = [4, 0, 0], sizes = [4, 8, 8], strides = [1, 1, 1]} : vector<12x8x8xbf16> to vector<4x8x8xbf16>
    %21 = vector.extract_strided_slice %18 {offsets = [8, 0, 0], sizes = [4, 8, 8], strides = [1, 1, 1]} : vector<12x8x8xbf16> to vector<4x8x8xbf16>
    "tpu.trace_start"() <{level = 10 : i32, message = "htd,hsd->hts"}> : () -> ()
    %cst_14 = arith.constant dense<0.000000e+00> : vector<4x8x8xf32>
    %22 = tpu.matmul %19, %20, %cst_14 {dimension_numbers = #tpu.dot_dimension_numbers<[2], [2], [1], [1], [0, 0, 0, 1, 1, 1], [0], [0]>} : vector<4x8x8xbf16>, vector<4x8x8xbf16>, vector<4x8x8xf32> -> vector<4x8x8xf32>
    "tpu.trace_stop"() : () -> ()
    %23 = vector.shape_cast %9 : vector<8x8xf32> to vector<1x8x8xf32>
    %24 = vector.broadcast %23 : vector<1x8x8xf32> to vector<4x8x8xf32>
    %25 = arith.addf %22, %24 : vector<4x8x8xf32>
    %cst_15 = arith.constant dense<0xFF800000> : vector<4x8xf32>
    %26 = vector.multi_reduction <maximumf>, %25, %cst_15 [2] : vector<4x8x8xf32> to vector<4x8xf32>
    %27 = vector.shape_cast %26 : vector<4x8xf32> to vector<4x8x1xf32>
    %28 = vector.broadcast %27 : vector<4x8x1xf32> to vector<4x8x8xf32>
    %29 = arith.subf %25, %28 : vector<4x8x8xf32>
    %30 = math.exp %29 : vector<4x8x8xf32>
    %cst_16 = arith.constant dense<0.000000e+00> : vector<4x8xf32>
    %31 = vector.multi_reduction <add>, %30, %cst_16 [2] : vector<4x8x8xf32> to vector<4x8xf32>
    %32 = vector.shape_cast %31 : vector<4x8xf32> to vector<4x8x1xf32>
    %33 = arith.truncf %30 : vector<4x8x8xf32> to vector<4x8x8xbf16>
    "tpu.trace_start"() <{level = 10 : i32, message = "hts,hsd->htd"}> : () -> ()
    %cst_17 = arith.constant dense<0.000000e+00> : vector<4x8x8xf32>
    %34 = tpu.matmul %33, %21, %cst_17 {dimension_numbers = #tpu.dot_dimension_numbers<[2], [1], [1], [2], [0, 0, 0, 1, 1, 2], [0], [0]>} : vector<4x8x8xbf16>, vector<4x8x8xbf16>, vector<4x8x8xf32> -> vector<4x8x8xf32>
    "tpu.trace_stop"() : () -> ()
    %35 = tpu.reciprocal %32 : vector<4x8x1xf32> -> vector<4x8x1xf32>
    %36 = vector.broadcast %35 : vector<4x8x1xf32> to vector<4x8x8xf32>
    %37 = arith.mulf %34, %36 : vector<4x8x8xf32>
    %38 = tpu.transpose %37, [1, 0, 2] : vector<4x8x8xf32> -> vector<8x4x8xf32>
    %39 = vector.shape_cast %38 : vector<8x4x8xf32> to vector<8x32xf32>
    %40 = arith.truncf %39 : vector<8x32xf32> to vector<8x32xbf16>
    %c0_18 = arith.constant 0 : index
    %c0_19 = arith.constant 0 : index
    %41 = vector.load %arg6[%c0_18, %c0_19] : memref<32x32xbf16, #tpu.memory_space<vmem>>, vector<32x32xbf16>
    %cst_20 = arith.constant dense<0.000000e+00> : vector<8x32xf32>
    %42 = tpu.matmul %40, %41, %cst_20 {dimension_numbers = #tpu.dot_dimension_numbers<[1], [0], [0], [1], [0, 0, 1, 1], [], []>} : vector<8x32xbf16>, vector<32x32xbf16>, vector<8x32xf32> -> vector<8x32xf32>
    %c0_21 = arith.constant 0 : index
    %c0_22 = arith.constant 0 : index
    %43 = vector.load %arg7[%c0_21, %c0_22] : memref<1x32xf32, #tpu.memory_space<vmem>>, vector<1x32xf32>
    %44 = vector.broadcast %43 : vector<1x32xf32> to vector<8x32xf32>
    %45 = arith.addf %42, %44 : vector<8x32xf32>
    %46 = arith.addf %1, %45 : vector<8x32xf32>
    %c0_23 = arith.constant 0 : index
    %c0_24 = arith.constant 0 : index
    %47 = vector.load %arg18[%c0_23, %c0_24] : memref<3x32xf32, #tpu.memory_space<vmem>>, vector<1x32xf32>
    %c0_25 = arith.constant 0 : index
    %c0_26 = arith.constant 0 : index
    %48 = vector.load %arg19[%c0_25, %c0_26] : memref<3x32xf32, #tpu.memory_space<vmem>>, vector<1x32xf32>
    %cst_27 = arith.constant dense<0.000000e+00> : vector<8xf32>
    %49 = vector.multi_reduction <add>, %46, %cst_27 [1] : vector<8x32xf32> to vector<8xf32>
    %50 = vector.shape_cast %49 : vector<8xf32> to vector<8x1xf32>
    %cst_28 = arith.constant 3.200000e+01 : f32
    %51 = vector.broadcast %cst_28 : f32 to vector<8x1xf32>
    %52 = arith.divf %50, %51 : vector<8x1xf32>
    %53 = vector.broadcast %52 : vector<8x1xf32> to vector<8x32xf32>
    %54 = arith.subf %46, %53 : vector<8x32xf32>
    %55 = arith.mulf %54, %54 : vector<8x32xf32>
    %cst_29 = arith.constant dense<0.000000e+00> : vector<8xf32>
    %56 = vector.multi_reduction <add>, %55, %cst_29 [1] : vector<8x32xf32> to vector<8xf32>
    %57 = vector.shape_cast %56 : vector<8xf32> to vector<8x1xf32>
    %cst_30 = arith.constant 3.200000e+01 : f32
    %58 = vector.broadcast %cst_30 : f32 to vector<8x1xf32>
    %59 = arith.divf %57, %58 : vector<8x1xf32>
    %60 = vector.broadcast %52 : vector<8x1xf32> to vector<8x32xf32>
    %61 = arith.subf %46, %60 : vector<8x32xf32>
    %cst_31 = arith.constant 9.99999974E-6 : f32
    %62 = vector.broadcast %cst_31 : f32 to vector<8x1xf32>
    %63 = arith.addf %59, %62 : vector<8x1xf32>
    %64 = math.rsqrt %63 : vector<8x1xf32>
    %65 = vector.broadcast %64 : vector<8x1xf32> to vector<8x32xf32>
    %66 = arith.mulf %61, %65 : vector<8x32xf32>
    %67 = vector.broadcast %47 : vector<1x32xf32> to vector<8x32xf32>
    %68 = arith.mulf %66, %67 : vector<8x32xf32>
    %69 = vector.broadcast %48 : vector<1x32xf32> to vector<8x32xf32>
    %70 = arith.addf %68, %69 : vector<8x32xf32>
    %71 = arith.truncf %70 : vector<8x32xf32> to vector<8x32xbf16>
    %c0_32 = arith.constant 0 : index
    %c0_33 = arith.constant 0 : index
    %72 = vector.load %arg8[%c0_32, %c0_33] : memref<32x32xbf16, #tpu.memory_space<vmem>>, vector<32x32xbf16>
    %cst_34 = arith.constant dense<0.000000e+00> : vector<8x32xf32>
    %73 = tpu.matmul %71, %72, %cst_34 {dimension_numbers = #tpu.dot_dimension_numbers<[1], [0], [0], [1], [0, 0, 1, 1], [], []>} : vector<8x32xbf16>, vector<32x32xbf16>, vector<8x32xf32> -> vector<8x32xf32>
    %c0_35 = arith.constant 0 : index
    %c0_36 = arith.constant 0 : index
    %74 = vector.load %arg9[%c0_35, %c0_36] : memref<1x32xf32, #tpu.memory_space<vmem>>, vector<1x32xf32>
    %75 = vector.broadcast %74 : vector<1x32xf32> to vector<8x32xf32>
    %76 = arith.addf %73, %75 : vector<8x32xf32>
    %77 = arith.truncf %3 : vector<8x32xf32> to vector<8x32xbf16>
    %c0_37 = arith.constant 0 : index
    %c0_38 = arith.constant 0 : index
    %78 = vector.load %arg10[%c0_37, %c0_38] : memref<32x64xbf16, #tpu.memory_space<vmem>>, vector<32x64xbf16>
    %cst_39 = arith.constant dense<0.000000e+00> : vector<8x64xf32>
    %79 = tpu.matmul %77, %78, %cst_39 {dimension_numbers = #tpu.dot_dimension_numbers<[1], [0], [0], [1], [0, 0, 1, 1], [], []>} : vector<8x32xbf16>, vector<32x64xbf16>, vector<8x64xf32> -> vector<8x64xf32>
    %c0_40 = arith.constant 0 : index
    %c0_41 = arith.constant 0 : index
    %80 = vector.load %arg11[%c0_40, %c0_41] : memref<1x64xf32, #tpu.memory_space<vmem>>, vector<1x64xf32>
    %81 = vector.broadcast %80 : vector<1x64xf32> to vector<8x64xf32>
    %82 = arith.addf %79, %81 : vector<8x64xf32>
    %83 = vector.shape_cast %76 : vector<8x32xf32> to vector<8x4x8xf32>
    %84 = tpu.transpose %83, [1, 0, 2] : vector<8x4x8xf32> -> vector<4x8x8xf32>
    %85 = arith.truncf %84 : vector<4x8x8xf32> to vector<4x8x8xbf16>
    %86 = vector.shape_cast %82 : vector<8x64xf32> to vector<8x8x8xf32>
    %87 = tpu.transpose %86, [1, 0, 2] : vector<8x8x8xf32> -> vector<8x8x8xf32>
    %88 = arith.truncf %87 : vector<8x8x8xf32> to vector<8x8x8xbf16>
    %89 = vector.extract_strided_slice %88 {offsets = [0, 0, 0], sizes = [4, 8, 8], strides = [1, 1, 1]} : vector<8x8x8xbf16> to vector<4x8x8xbf16>
    %90 = vector.extract_strided_slice %88 {offsets = [4, 0, 0], sizes = [4, 8, 8], strides = [1, 1, 1]} : vector<8x8x8xbf16> to vector<4x8x8xbf16>
    "tpu.trace_start"() <{level = 10 : i32, message = "htd,hsd->hts"}> : () -> ()
    %cst_42 = arith.constant dense<0.000000e+00> : vector<4x8x8xf32>
    %91 = tpu.matmul %85, %89, %cst_42 {dimension_numbers = #tpu.dot_dimension_numbers<[2], [2], [1], [1], [0, 0, 0, 1, 1, 1], [0], [0]>} : vector<4x8x8xbf16>, vector<4x8x8xbf16>, vector<4x8x8xf32> -> vector<4x8x8xf32>
    "tpu.trace_stop"() : () -> ()
    %cst_43 = arith.constant dense<0xFF800000> : vector<4x8xf32>
    %92 = vector.multi_reduction <maximumf>, %91, %cst_43 [2] : vector<4x8x8xf32> to vector<4x8xf32>
    %93 = vector.shape_cast %92 : vector<4x8xf32> to vector<4x8x1xf32>
    %94 = vector.broadcast %93 : vector<4x8x1xf32> to vector<4x8x8xf32>
    %95 = arith.subf %91, %94 : vector<4x8x8xf32>
    %96 = math.exp %95 : vector<4x8x8xf32>
    %cst_44 = arith.constant dense<0.000000e+00> : vector<4x8xf32>
    %97 = vector.multi_reduction <add>, %96, %cst_44 [2] : vector<4x8x8xf32> to vector<4x8xf32>
    %98 = vector.shape_cast %97 : vector<4x8xf32> to vector<4x8x1xf32>
    %99 = arith.truncf %96 : vector<4x8x8xf32> to vector<4x8x8xbf16>
    "tpu.trace_start"() <{level = 10 : i32, message = "hts,hsd->htd"}> : () -> ()
    %cst_45 = arith.constant dense<0.000000e+00> : vector<4x8x8xf32>
    %100 = tpu.matmul %99, %90, %cst_45 {dimension_numbers = #tpu.dot_dimension_numbers<[2], [1], [1], [2], [0, 0, 0, 1, 1, 2], [0], [0]>} : vector<4x8x8xbf16>, vector<4x8x8xbf16>, vector<4x8x8xf32> -> vector<4x8x8xf32>
    "tpu.trace_stop"() : () -> ()
    %101 = tpu.reciprocal %98 : vector<4x8x1xf32> -> vector<4x8x1xf32>
    %102 = vector.broadcast %101 : vector<4x8x1xf32> to vector<4x8x8xf32>
    %103 = arith.mulf %100, %102 : vector<4x8x8xf32>
    %104 = tpu.transpose %103, [1, 0, 2] : vector<4x8x8xf32> -> vector<8x4x8xf32>
    %105 = vector.shape_cast %104 : vector<8x4x8xf32> to vector<8x32xf32>
    %106 = arith.truncf %105 : vector<8x32xf32> to vector<8x32xbf16>
    %c0_46 = arith.constant 0 : index
    %c0_47 = arith.constant 0 : index
    %107 = vector.load %arg12[%c0_46, %c0_47] : memref<32x32xbf16, #tpu.memory_space<vmem>>, vector<32x32xbf16>
    %cst_48 = arith.constant dense<0.000000e+00> : vector<8x32xf32>
    %108 = tpu.matmul %106, %107, %cst_48 {dimension_numbers = #tpu.dot_dimension_numbers<[1], [0], [0], [1], [0, 0, 1, 1], [], []>} : vector<8x32xbf16>, vector<32x32xbf16>, vector<8x32xf32> -> vector<8x32xf32>
    %c0_49 = arith.constant 0 : index
    %c0_50 = arith.constant 0 : index
    %109 = vector.load %arg13[%c0_49, %c0_50] : memref<1x32xf32, #tpu.memory_space<vmem>>, vector<1x32xf32>
    %110 = vector.broadcast %109 : vector<1x32xf32> to vector<8x32xf32>
    %111 = arith.addf %108, %110 : vector<8x32xf32>
    %112 = arith.addf %70, %111 : vector<8x32xf32>
    %c1 = arith.constant 1 : index
    %c0_51 = arith.constant 0 : index
    %113 = vector.load %arg18[%c1, %c0_51] : memref<3x32xf32, #tpu.memory_space<vmem>>, vector<1x32xf32>
    %c1_52 = arith.constant 1 : index
    %c0_53 = arith.constant 0 : index
    %114 = vector.load %arg19[%c1_52, %c0_53] : memref<3x32xf32, #tpu.memory_space<vmem>>, vector<1x32xf32>
    %cst_54 = arith.constant dense<0.000000e+00> : vector<8xf32>
    %115 = vector.multi_reduction <add>, %112, %cst_54 [1] : vector<8x32xf32> to vector<8xf32>
    %116 = vector.shape_cast %115 : vector<8xf32> to vector<8x1xf32>
    %cst_55 = arith.constant 3.200000e+01 : f32
    %117 = vector.broadcast %cst_55 : f32 to vector<8x1xf32>
    %118 = arith.divf %116, %117 : vector<8x1xf32>
    %119 = vector.broadcast %118 : vector<8x1xf32> to vector<8x32xf32>
    %120 = arith.subf %112, %119 : vector<8x32xf32>
    %121 = arith.mulf %120, %120 : vector<8x32xf32>
    %cst_56 = arith.constant dense<0.000000e+00> : vector<8xf32>
    %122 = vector.multi_reduction <add>, %121, %cst_56 [1] : vector<8x32xf32> to vector<8xf32>
    %123 = vector.shape_cast %122 : vector<8xf32> to vector<8x1xf32>
    %cst_57 = arith.constant 3.200000e+01 : f32
    %124 = vector.broadcast %cst_57 : f32 to vector<8x1xf32>
    %125 = arith.divf %123, %124 : vector<8x1xf32>
    %126 = vector.broadcast %118 : vector<8x1xf32> to vector<8x32xf32>
    %127 = arith.subf %112, %126 : vector<8x32xf32>
    %cst_58 = arith.constant 9.99999974E-6 : f32
    %128 = vector.broadcast %cst_58 : f32 to vector<8x1xf32>
    %129 = arith.addf %125, %128 : vector<8x1xf32>
    %130 = math.rsqrt %129 : vector<8x1xf32>
    %131 = vector.broadcast %130 : vector<8x1xf32> to vector<8x32xf32>
    %132 = arith.mulf %127, %131 : vector<8x32xf32>
    %133 = vector.broadcast %113 : vector<1x32xf32> to vector<8x32xf32>
    %134 = arith.mulf %132, %133 : vector<8x32xf32>
    %135 = vector.broadcast %114 : vector<1x32xf32> to vector<8x32xf32>
    %136 = arith.addf %134, %135 : vector<8x32xf32>
    %137 = arith.truncf %136 : vector<8x32xf32> to vector<8x32xbf16>
    %c0_59 = arith.constant 0 : index
    %c0_60 = arith.constant 0 : index
    %138 = vector.load %arg14[%c0_59, %c0_60] : memref<32x64xbf16, #tpu.memory_space<vmem>>, vector<32x64xbf16>
    %cst_61 = arith.constant dense<0.000000e+00> : vector<8x64xf32>
    %139 = tpu.matmul %137, %138, %cst_61 {dimension_numbers = #tpu.dot_dimension_numbers<[1], [0], [0], [1], [0, 0, 1, 1], [], []>} : vector<8x32xbf16>, vector<32x64xbf16>, vector<8x64xf32> -> vector<8x64xf32>
    %c0_62 = arith.constant 0 : index
    %c0_63 = arith.constant 0 : index
    %140 = vector.load %arg15[%c0_62, %c0_63] : memref<1x64xf32, #tpu.memory_space<vmem>>, vector<1x64xf32>
    %141 = vector.broadcast %140 : vector<1x64xf32> to vector<8x64xf32>
    %142 = arith.addf %139, %141 : vector<8x64xf32>
    %cst_64 = arith.constant 0.000000e+00 : f32
    %143 = vector.broadcast %cst_64 : f32 to vector<8x64xf32>
    %144 = arith.maximumf %142, %143 : vector<8x64xf32>
    %145 = arith.truncf %144 : vector<8x64xf32> to vector<8x64xbf16>
    %c0_65 = arith.constant 0 : index
    %c0_66 = arith.constant 0 : index
    %146 = vector.load %arg16[%c0_65, %c0_66] : memref<64x32xbf16, #tpu.memory_space<vmem>>, vector<64x32xbf16>
    %cst_67 = arith.constant dense<0.000000e+00> : vector<8x32xf32>
    %147 = tpu.matmul %145, %146, %cst_67 {dimension_numbers = #tpu.dot_dimension_numbers<[1], [0], [0], [1], [0, 0, 1, 1], [], []>} : vector<8x64xbf16>, vector<64x32xbf16>, vector<8x32xf32> -> vector<8x32xf32>
    %c0_68 = arith.constant 0 : index
    %c0_69 = arith.constant 0 : index
    %148 = vector.load %arg17[%c0_68, %c0_69] : memref<1x32xf32, #tpu.memory_space<vmem>>, vector<1x32xf32>
    %149 = vector.broadcast %148 : vector<1x32xf32> to vector<8x32xf32>
    %150 = arith.addf %147, %149 : vector<8x32xf32>
    %151 = arith.addf %136, %150 : vector<8x32xf32>
    %c2 = arith.constant 2 : index
    %c0_70 = arith.constant 0 : index
    %152 = vector.load %arg18[%c2, %c0_70] : memref<3x32xf32, #tpu.memory_space<vmem>>, vector<1x32xf32>
    %c2_71 = arith.constant 2 : index
    %c0_72 = arith.constant 0 : index
    %153 = vector.load %arg19[%c2_71, %c0_72] : memref<3x32xf32, #tpu.memory_space<vmem>>, vector<1x32xf32>
    %cst_73 = arith.constant dense<0.000000e+00> : vector<8xf32>
    %154 = vector.multi_reduction <add>, %151, %cst_73 [1] : vector<8x32xf32> to vector<8xf32>
    %155 = vector.shape_cast %154 : vector<8xf32> to vector<8x1xf32>
    %cst_74 = arith.constant 3.200000e+01 : f32
    %156 = vector.broadcast %cst_74 : f32 to vector<8x1xf32>
    %157 = arith.divf %155, %156 : vector<8x1xf32>
    %158 = vector.broadcast %157 : vector<8x1xf32> to vector<8x32xf32>
    %159 = arith.subf %151, %158 : vector<8x32xf32>
    %160 = arith.mulf %159, %159 : vector<8x32xf32>
    %cst_75 = arith.constant dense<0.000000e+00> : vector<8xf32>
    %161 = vector.multi_reduction <add>, %160, %cst_75 [1] : vector<8x32xf32> to vector<8xf32>
    %162 = vector.shape_cast %161 : vector<8xf32> to vector<8x1xf32>
    %cst_76 = arith.constant 3.200000e+01 : f32
    %163 = vector.broadcast %cst_76 : f32 to vector<8x1xf32>
    %164 = arith.divf %162, %163 : vector<8x1xf32>
    %165 = vector.broadcast %157 : vector<8x1xf32> to vector<8x32xf32>
    %166 = arith.subf %151, %165 : vector<8x32xf32>
    %cst_77 = arith.constant 9.99999974E-6 : f32
    %167 = vector.broadcast %cst_77 : f32 to vector<8x1xf32>
    %168 = arith.addf %164, %167 : vector<8x1xf32>
    %169 = math.rsqrt %168 : vector<8x1xf32>
    %170 = vector.broadcast %169 : vector<8x1xf32> to vector<8x32xf32>
    %171 = arith.mulf %166, %170 : vector<8x32xf32>
    %172 = vector.broadcast %152 : vector<1x32xf32> to vector<8x32xf32>
    %173 = arith.mulf %171, %172 : vector<8x32xf32>
    %174 = vector.broadcast %153 : vector<1x32xf32> to vector<8x32xf32>
    %175 = arith.addf %173, %174 : vector<8x32xf32>
    %c0_78 = arith.constant 0 : index
    %c0_79 = arith.constant 0 : index
    %c0_80 = arith.constant 0 : index
    %176 = vector.load %arg20[%c0_78, %c0_79, %c0_80] : memref<1x8x32xf32, #tpu.memory_space<vmem>>, vector<1x8x32xf32>
    %177 = vector.shape_cast %176 : vector<1x8x32xf32> to vector<8x32xf32>
    %178 = vector.shape_cast %175 : vector<8x32xf32> to vector<1x8x32xf32>
    tpu.vector_store %arg20[%c0_78, %c0_79, %c0_80], %178 {strides = array<i32>} : memref<1x8x32xf32, #tpu.memory_space<vmem>>, vector<1x8x32xf32>,
    return
  }
  func.func @transform_0(%arg0: i32) -> (i32, i32, i32) {
    %c0_i32 = arith.constant 0 : i32
    %c0_i32_0 = arith.constant 0 : i32
    %c0_i32_1 = arith.constant 0 : i32
    return %arg0, %c0_i32, %c0_i32_0 : i32, i32, i32
  }
  func.func @transform_1(%arg0: i32) -> (i32, i32, i32) {
    %c0_i32 = arith.constant 0 : i32
    %c0_i32_0 = arith.constant 0 : i32
    %c0_i32_1 = arith.constant 0 : i32
    return %arg0, %c0_i32, %c0_i32_0 : i32, i32, i32
  }
  func.func @transform_2(%arg0: i32) -> (i32, i32) {
    %c0_i32 = arith.constant 0 : i32
    %c0_i32_0 = arith.constant 0 : i32
    %c0_i32_1 = arith.constant 0 : i32
    return %c0_i32, %c0_i32_0 : i32, i32
  }
  func.func @transform_3(%arg0: i32) -> (i32, i32) {
    %c0_i32 = arith.constant 0 : i32
    %c0_i32_0 = arith.constant 0 : i32
    %c0_i32_1 = arith.constant 0 : i32
    return %c0_i32, %c0_i32_0 : i32, i32
  }
  func.func @transform_4(%arg0: i32) -> (i32, i32) {
    %c0_i32 = arith.constant 0 : i32
    %c0_i32_0 = arith.constant 0 : i32
    %c0_i32_1 = arith.constant 0 : i32
    return %c0_i32, %c0_i32_0 : i32, i32
  }
  func.func @transform_5(%arg0: i32) -> (i32, i32) {
    %c0_i32 = arith.constant 0 : i32
    %c0_i32_0 = arith.constant 0 : i32
    %c0_i32_1 = arith.constant 0 : i32
    return %c0_i32, %c0_i32_0 : i32, i32
  }
  func.func @transform_6(%arg0: i32) -> (i32, i32) {
    %c0_i32 = arith.constant 0 : i32
    %c0_i32_0 = arith.constant 0 : i32
    %c0_i32_1 = arith.constant 0 : i32
    return %c0_i32, %c0_i32_0 : i32, i32
  }
  func.func @transform_7(%arg0: i32) -> (i32, i32) {
    %c0_i32 = arith.constant 0 : i32
    %c0_i32_0 = arith.constant 0 : i32
    %c0_i32_1 = arith.constant 0 : i32
    return %c0_i32, %c0_i32_0 : i32, i32
  }
  func.func @transform_8(%arg0: i32) -> (i32, i32) {
    %c0_i32 = arith.constant 0 : i32
    %c0_i32_0 = arith.constant 0 : i32
    %c0_i32_1 = arith.constant 0 : i32
    return %c0_i32, %c0_i32_0 : i32, i32
  }
  func.func @transform_9(%arg0: i32) -> (i32, i32) {
    %c0_i32 = arith.constant 0 : i32
    %c0_i32_0 = arith.constant 0 : i32
    %c0_i32_1 = arith.constant 0 : i32
    return %c0_i32, %c0_i32_0 : i32, i32
  }
  func.func @transform_10(%arg0: i32) -> (i32, i32) {
    %c0_i32 = arith.constant 0 : i32
    %c0_i32_0 = arith.constant 0 : i32
    %c0_i32_1 = arith.constant 0 : i32
    return %c0_i32, %c0_i32_0 : i32, i32
  }
  func.func @transform_11(%arg0: i32) -> (i32, i32) {
    %c0_i32 = arith.constant 0 : i32
    %c0_i32_0 = arith.constant 0 : i32
    %c0_i32_1 = arith.constant 0 : i32
    return %c0_i32, %c0_i32_0 : i32, i32
  }
  func.func @transform_12(%arg0: i32) -> (i32, i32) {
    %c0_i32 = arith.constant 0 : i32
    %c0_i32_0 = arith.constant 0 : i32
    %c0_i32_1 = arith.constant 0 : i32
    return %c0_i32, %c0_i32_0 : i32, i32
  }
  func.func @transform_13(%arg0: i32) -> (i32, i32) {
    %c0_i32 = arith.constant 0 : i32
    %c0_i32_0 = arith.constant 0 : i32
    %c0_i32_1 = arith.constant 0 : i32
    return %c0_i32, %c0_i32_0 : i32, i32
  }
  func.func @transform_14(%arg0: i32) -> (i32, i32) {
    %c0_i32 = arith.constant 0 : i32
    %c0_i32_0 = arith.constant 0 : i32
    %c0_i32_1 = arith.constant 0 : i32
    return %c0_i32, %c0_i32_0 : i32, i32
  }
  func.func @transform_15(%arg0: i32) -> (i32, i32) {
    %c0_i32 = arith.constant 0 : i32
    %c0_i32_0 = arith.constant 0 : i32
    %c0_i32_1 = arith.constant 0 : i32
    return %c0_i32, %c0_i32_0 : i32, i32
  }
  func.func @transform_16(%arg0: i32) -> (i32, i32) {
    %c0_i32 = arith.constant 0 : i32
    %c0_i32_0 = arith.constant 0 : i32
    %c0_i32_1 = arith.constant 0 : i32
    return %c0_i32, %c0_i32_0 : i32, i32
  }
  func.func @transform_17(%arg0: i32) -> (i32, i32) {
    %c0_i32 = arith.constant 0 : i32
    %c0_i32_0 = arith.constant 0 : i32
    %c0_i32_1 = arith.constant 0 : i32
    return %c0_i32, %c0_i32_0 : i32, i32
  }
  func.func @transform_18(%arg0: i32) -> (i32, i32) {
    %c0_i32 = arith.constant 0 : i32
    %c0_i32_0 = arith.constant 0 : i32
    %c0_i32_1 = arith.constant 0 : i32
    return %c0_i32, %c0_i32_0 : i32, i32
  }
  func.func @transform_19(%arg0: i32) -> (i32, i32, i32) {
    %c0_i32 = arith.constant 0 : i32
    %c0_i32_0 = arith.constant 0 : i32
    %c0_i32_1 = arith.constant 0 : i32
    return %arg0, %c0_i32, %c0_i32_0 : i32, i32, i32
  }
}

</mosaic_0001>

<llo_original>
// kernel: tpu_custom_call.1
$region0: #{tpu_custom_call.1}
  #allocation0 [shape = 'u32[]', space=smem, size = 0x4, offset = 0x4, fixed_abs, tag = 'smem constant byte address 0x4 - core index']
  #allocation1 [shape = 'u32[72,128]{1,0:T(1,128)}', space=vmem, size = 0x9000, scoped, tag = 'internal scratch']
  %s0 = inlined_call_operand.vmem [shape: f32[2,8,32], index: 0, kind: input, shape index: {}]
  %s1 = inlined_call_operand.vmem [shape: f32[2,8,32], index: 1, kind: input, shape index: {}]
  %s2 = inlined_call_operand.hbm [shape: f32[8,8], index: 2, kind: input, shape index: {}]
  %s3 = inlined_call_operand.vmem [shape: bf16[32,96], index: 3, kind: input, shape index: {}]
  %s4 = inlined_call_operand.hbm [shape: f32[1,96], index: 4, kind: input, shape index: {}]
  %s5 = inlined_call_operand.hbm [shape: bf16[32,32], index: 5, kind: input, shape index: {}]
  %s6 = inlined_call_operand.hbm [shape: f32[1,32], index: 6, kind: input, shape index: {}]
  %s7 = inlined_call_operand.hbm [shape: bf16[32,32], index: 7, kind: input, shape index: {}]
  %s8 = inlined_call_operand.hbm [shape: f32[1,32], index: 8, kind: input, shape index: {}]
  %s9 = inlined_call_operand.hbm [shape: bf16[32,64], index: 9, kind: input, shape index: {}]
  %s10 = inlined_call_operand.vmem [shape: f32[1,64], index: 10, kind: input, shape index: {}]
  %s11 = inlined_call_operand.hbm [shape: bf16[32,32], index: 11, kind: input, shape index: {}]
  %s12 = inlined_call_operand.vmem [shape: f32[1,32], index: 12, kind: input, shape index: {}]
  %s13 = inlined_call_operand.hbm [shape: bf16[32,64], index: 13, kind: input, shape index: {}]
  %s14 = inlined_call_operand.vmem [shape: f32[1,64], index: 14, kind: input, shape index: {}]
  %s15 = inlined_call_operand.vmem [shape: bf16[64,32], index: 15, kind: input, shape index: {}]
  %s16 = inlined_call_operand.vmem [shape: f32[1,32], index: 16, kind: input, shape index: {}]
  %s17 = inlined_call_operand.vmem [shape: f32[3,32], index: 17, kind: input, shape index: {}]
  %s18 = inlined_call_operand.vmem [shape: f32[3,32], index: 18, kind: input, shape index: {}]
  %s19 = inlined_call_operand.hbm [shape: f32[2,8,32], index: 19, kind: output, shape index: {}]
  %s20 = sld [smem:[#allocation0]]
  $region145: #{tpu_custom_call.1} parent=0
    _
  %s22 = ssub.s32 1, %s20
  %s23 = scalar_select 0, %s22, %s20
  $region1: #{tpu_custom_call.1} parent=0
    #allocation2 [shape = 'u8[4096]{0}', space=vmem, size = 0x1000, scoped, tag = 'input window, operand 2, single buffered']
    #allocation3 [shape = 's32[2]{0}', space=sflag, size = 0x8, scoped, tag = 'scoped memory for tpu_custom_call.1']
    #allocation4 [shape = 's32[2]{0}', space=sflag, size = 0x8, scoped, tag = 'scoped memory for tpu_custom_call.1']
    #allocation5 [shape = 'u8[512]{0}', space=vmem, size = 0x400, scoped, tag = 'input window, operand 4, single buffered']
    #allocation6 [shape = 's32[1]{0}', space=sflag, size = 0x4, scoped, tag = 'scoped memory for tpu_custom_call.1']
    #allocation7 [shape = 'u8[8192]{0}', space=vmem, size = 0x2000, scoped, tag = 'input window, operand 5, single buffered']
    #allocation8 [shape = 'u8[512]{0}', space=vmem, size = 0x400, scoped, tag = 'input window, operand 6, single buffered']
    #allocation9 [shape = 's32[1]{0}', space=sflag, size = 0x4, scoped, tag = 'scoped memory for tpu_custom_call.1']
    #allocation10 [shape = 'u8[8192]{0}', space=vmem, size = 0x2000, scoped, tag = 'input window, operand 7, single buffered']
    #allocation11 [shape = 'u8[512]{0}', space=vmem, size = 0x400, scoped, tag = 'input window, operand 8, single buffered']
    #allocation12 [shape = 's32[1]{0}', space=sflag, size = 0x4, scoped, tag = 'scoped memory for tpu_custom_call.1']
    #allocation13 [shape = 'u8[8192]{0}', space=vmem, size = 0x2000, scoped, tag = 'input window, operand 9, single buffered']
    #allocation14 [shape = 'u8[8192]{0}', space=vmem, size = 0x2000, scoped, tag = 'input window, operand 11, single buffered']
    #allocation15 [shape = 's32[1]{0}', space=sflag, size = 0x4, scoped, tag = 'scoped memory for tpu_custom_call.1']
    #allocation16 [shape = 'u8[8192]{0}', space=vmem, size = 0x2000, scoped, tag = 'input window, operand 13, single buffered']
    #allocation17 [shape = 'u8[8192]{0}', space=vmem, size = 0x2000, scoped, tag = 'output window, operand 0']
    %24 = vsyncpa [#allocation3], 0
    %25 = vsyncpa [#allocation6], 0
    %26 = vsyncpa [#allocation9], 0
    %27 = vsyncpa [#allocation12], 0
    %28 = vsyncpa [#allocation15], 0
    %29 = vsyncpa [#allocation4], 0
    %s30 = scalar_lea.sflag [#allocation4], 1
    %31 = vsyncpa %s30, 0
    loop: start=0, step=1, limit=4
    $region2: #{tpu_custom_call.1} parent=1 // loop_pre_header
      _
    $region3: #{tpu_custom_call.1} parent=1 // loop_header
      %s33 = sphi 0, %s37
      %p34 = scmp.ge.s32.totalorder %s33, 4
      %s43 = sphi 0, %s45
      %s46 = sphi 0, %s43
      %s47 = sphi 0, %s46
      %s63 = sphi 0, %s47
      %s69 = sphi 0, %s71
      %s72 = sphi 0, %s69
      %s73 = sphi 0, %s72
      %s89 = sphi 0, %s73
      %s93 = sphi 0, %s93
      %s95 = sphi 0, %s93
      %s96 = sphi 0, %s95
      %s110 = sphi 0, %s96
      %s114 = sphi 0, %s114
      %s116 = sphi 0, %s114
      %s117 = sphi 0, %s116
      %s131 = sphi 0, %s117
      %s135 = sphi 0, %s135
      %s137 = sphi 0, %s135
      %s138 = sphi 0, %s137
      %s152 = sphi 0, %s138
      %s156 = sphi 0, %s156
      %s158 = sphi 0, %s156
      %s159 = sphi 0, %s158
      %s173 = sphi 0, %s159
      %s177 = sphi 0, %s177
      %s179 = sphi 0, %s177
      %s180 = sphi 0, %s179
      %s194 = sphi 0, %s180
      %s198 = sphi 0, %s198
      %s200 = sphi 0, %s198
      %s201 = sphi 0, %s200
      %s215 = sphi 0, %s201
      %s219 = sphi 0, %s219
      %s221 = sphi 0, %s219
      %s222 = sphi 0, %s221
      %s236 = sphi 0, %s222
      %s240 = sphi 0, %s240
      %s242 = sphi 0, %s240
      %s243 = sphi 0, %s242
      %s257 = sphi 0, %s243
      %s261 = sphi 0, %s261
      %s263 = sphi 0, %s261
      %s264 = sphi 0, %s263
      %s278 = sphi 0, %s264
      %s282 = sphi 0, %s282
      %s284 = sphi 0, %s282
      %s285 = sphi 0, %s284
      %s299 = sphi 0, %s285
      %s303 = sphi 0, %s303
      %s305 = sphi 0, %s303
      %s306 = sphi 0, %s305
      %s320 = sphi 0, %s306
      %s324 = sphi 0, %s324
      %s326 = sphi 0, %s324
      %s327 = sphi 0, %s326
      %s341 = sphi 0, %s327
      %s345 = sphi 0, %s345
      %s347 = sphi 0, %s345
      %s348 = sphi 0, %s347
      %s362 = sphi 0, %s348
      %s366 = sphi 0, %s366
      %s368 = sphi 0, %s366
      %s369 = sphi 0, %s368
      %s383 = sphi 0, %s369
      %s387 = sphi 0, %s387
      %s389 = sphi 0, %s387
      %s390 = sphi 0, %s389
      %s404 = sphi 0, %s390
      %s408 = sphi 0, %s408
      %s410 = sphi 0, %s408
      %s411 = sphi 0, %s410
      %s425 = sphi 0, %s411
      %s429 = sphi 0, %s429
      %s431 = sphi 0, %s429
      %s432 = sphi 0, %s431
      %s446 = sphi 0, %s432
      %s452 = sphi 0, %s454
      %s455 = sphi 0, %s452
      %s456 = sphi 0, %s455
      %s472 = sphi 0, %s456
    $region4: #{tpu_custom_call.1} parent=1 // loop_header_branch
      %36 = sbr.rel (%p34) target = $region8
    $region5: #{tpu_custom_call.1} parent=1 // loop_body
      %s38 = ssub.s32 %s33, 1
      %s39 = ssub.s32 %s33, 2
      %s40 = sadd.s32 %s33, 1
      %s41 = ssub.s32 %s33, %s40
      %p42 = scmp.eq.s32.totalorder %s41, 0
      %s44 = sadd.s32 %s43, 1
      %s45 = scalar_select %p42, %s43, %s44
      %p48 = pneg %p42
      %p49 = scmp.eq.s32.totalorder %s33, 1
      %p50 = por %p48, %p49
      %p51 = scmp.ne.s32.totalorder %s43, %s46
      %p52 = scmp.eq.s32.totalorder %s33, 0
      %p53 = por %p51, %p52
      %p54 = scmp.ne.s32.totalorder %s43, %s46
      %p55 = scmp.eq.s32.totalorder %s38, 1
      %p56 = por %p54, %p55
      %p57 = scmp.ne.s32.totalorder %s46, %s47
      %p58 = scmp.eq.s32.totalorder %s38, 0
      %p59 = por %p57, %p58
      %p60 = scmp.ne.s32.totalorder %s46, %s47
      %p61 = scmp.eq.s32.totalorder %s39, 1
      %p62 = por %p60, %p61
      %p64 = scmp.ne.s32.totalorder %s47, %s63
      %p65 = scmp.eq.s32.totalorder %s39, 0
      %p66 = por %p64, %p65
      %s67 = ssub.s32 %s33, %s40
      %p68 = scmp.eq.s32.totalorder %s67, 0
      %s70 = sadd.s32 %s69, 1
      %s71 = scalar_select %p68, %s69, %s70
      %p74 = pneg %p68
      %p75 = scmp.eq.s32.totalorder %s33, 1
      %p76 = por %p74, %p75
      %p77 = scmp.ne.s32.totalorder %s69, %s72
      %p78 = scmp.eq.s32.totalorder %s33, 0
      %p79 = por %p77, %p78
      %p80 = scmp.ne.s32.totalorder %s69, %s72
      %p81 = scmp.eq.s32.totalorder %s38, 1
      %p82 = por %p80, %p81
      %p83 = scmp.ne.s32.totalorder %s72, %s73
      %p84 = scmp.eq.s32.totalorder %s38, 0
      %p85 = por %p83, %p84
      %p86 = scmp.ne.s32.totalorder %s72, %s73
      %p87 = scmp.eq.s32.totalorder %s39, 1
      %p88 = por %p86, %p87
      %p90 = scmp.ne.s32.totalorder %s73, %s89
      %p91 = scmp.eq.s32.totalorder %s39, 0
      %p92 = por %p90, %p91
      %s94 = sadd.s32 %s93, 1
      %p97 = scmp.eq.s32.totalorder %s33, 1
      %p98 = scmp.ne.s32.totalorder %s93, %s95
      %p99 = scmp.eq.s32.totalorder %s33, 0
      %p100 = por %p98, %p99
      %p101 = scmp.ne.s32.totalorder %s93, %s95
      %p102 = scmp.eq.s32.totalorder %s38, 1
      %p103 = por %p101, %p102
      %p104 = scmp.ne.s32.totalorder %s95, %s96
      %p105 = scmp.eq.s32.totalorder %s38, 0
      %p106 = por %p104, %p105
      %p107 = scmp.ne.s32.totalorder %s95, %s96
      %p108 = scmp.eq.s32.totalorder %s39, 1
      %p109 = por %p107, %p108
      %p111 = scmp.ne.s32.totalorder %s96, %s110
      %p112 = scmp.eq.s32.totalorder %s39, 0
      %p113 = por %p111, %p112
      %s115 = sadd.s32 %s114, 1
      %p118 = scmp.eq.s32.totalorder %s33, 1
      %p119 = scmp.ne.s32.totalorder %s114, %s116
      %p120 = scmp.eq.s32.totalorder %s33, 0
      %p121 = por %p119, %p120
      %p122 = scmp.ne.s32.totalorder %s114, %s116
      %p123 = scmp.eq.s32.totalorder %s38, 1
      %p124 = por %p122, %p123
      %p125 = scmp.ne.s32.totalorder %s116, %s117
      %p126 = scmp.eq.s32.totalorder %s38, 0
      %p127 = por %p125, %p126
      %p128 = scmp.ne.s32.totalorder %s116, %s117
      %p129 = scmp.eq.s32.totalorder %s39, 1
      %p130 = por %p128, %p129
      %p132 = scmp.ne.s32.totalorder %s117, %s131
      %p133 = scmp.eq.s32.totalorder %s39, 0
      %p134 = por %p132, %p133
      %s136 = sadd.s32 %s135, 1
      %p139 = scmp.eq.s32.totalorder %s33, 1
      %p140 = scmp.ne.s32.totalorder %s135, %s137
      %p141 = scmp.eq.s32.totalorder %s33, 0
      %p142 = por %p140, %p141
      %p143 = scmp.ne.s32.totalorder %s135, %s137
      %p144 = scmp.eq.s32.totalorder %s38, 1
      %p145 = por %p143, %p144
      %p146 = scmp.ne.s32.totalorder %s137, %s138
      %p147 = scmp.eq.s32.totalorder %s38, 0
      %p148 = por %p146, %p147
      %p149 = scmp.ne.s32.totalorder %s137, %s138
      %p150 = scmp.eq.s32.totalorder %s39, 1
      %p151 = por %p149, %p150
      %p153 = scmp.ne.s32.totalorder %s138, %s152
      %p154 = scmp.eq.s32.totalorder %s39, 0
      %p155 = por %p153, %p154
      %s157 = sadd.s32 %s156, 1
      %p160 = scmp.eq.s32.totalorder %s33, 1
      %p161 = scmp.ne.s32.totalorder %s156, %s158
      %p162 = scmp.eq.s32.totalorder %s33, 0
      %p163 = por %p161, %p162
      %p164 = scmp.ne.s32.totalorder %s156, %s158
      %p165 = scmp.eq.s32.totalorder %s38, 1
      %p166 = por %p164, %p165
      %p167 = scmp.ne.s32.totalorder %s158, %s159
      %p168 = scmp.eq.s32.totalorder %s38, 0
      %p169 = por %p167, %p168
      %p170 = scmp.ne.s32.totalorder %s158, %s159
      %p171 = scmp.eq.s32.totalorder %s39, 1
      %p172 = por %p170, %p171
      %p174 = scmp.ne.s32.totalorder %s159, %s173
      %p175 = scmp.eq.s32.totalorder %s39, 0
      %p176 = por %p174, %p175
      %s178 = sadd.s32 %s177, 1
      %p181 = scmp.eq.s32.totalorder %s33, 1
      %p182 = scmp.ne.s32.totalorder %s177, %s179
      %p183 = scmp.eq.s32.totalorder %s33, 0
      %p184 = por %p182, %p183
      %p185 = scmp.ne.s32.totalorder %s177, %s179
      %p186 = scmp.eq.s32.totalorder %s38, 1
      %p187 = por %p185, %p186
      %p188 = scmp.ne.s32.totalorder %s179, %s180
      %p189 = scmp.eq.s32.totalorder %s38, 0
      %p190 = por %p188, %p189
      %p191 = scmp.ne.s32.totalorder %s179, %s180
      %p192 = scmp.eq.s32.totalorder %s39, 1
      %p193 = por %p191, %p192
      %p195 = scmp.ne.s32.totalorder %s180, %s194
      %p196 = scmp.eq.s32.totalorder %s39, 0
      %p197 = por %p195, %p196
      %s199 = sadd.s32 %s198, 1
      %p202 = scmp.eq.s32.totalorder %s33, 1
      %p203 = scmp.ne.s32.totalorder %s198, %s200
      %p204 = scmp.eq.s32.totalorder %s33, 0
      %p205 = por %p203, %p204
      %p206 = scmp.ne.s32.totalorder %s198, %s200
      %p207 = scmp.eq.s32.totalorder %s38, 1
      %p208 = por %p206, %p207
      %p209 = scmp.ne.s32.totalorder %s200, %s201
      %p210 = scmp.eq.s32.totalorder %s38, 0
      %p211 = por %p209, %p210
      %p212 = scmp.ne.s32.totalorder %s200, %s201
      %p213 = scmp.eq.s32.totalorder %s39, 1
      %p214 = por %p212, %p213
      %p216 = scmp.ne.s32.totalorder %s201, %s215
      %p217 = scmp.eq.s32.totalorder %s39, 0
      %p218 = por %p216, %p217
      %s220 = sadd.s32 %s219, 1
      %p223 = scmp.eq.s32.totalorder %s33, 1
      %p224 = scmp.ne.s32.totalorder %s219, %s221
      %p225 = scmp.eq.s32.totalorder %s33, 0
      %p226 = por %p224, %p225
      %p227 = scmp.ne.s32.totalorder %s219, %s221
      %p228 = scmp.eq.s32.totalorder %s38, 1
      %p229 = por %p227, %p228
      %p230 = scmp.ne.s32.totalorder %s221, %s222
      %p231 = scmp.eq.s32.totalorder %s38, 0
      %p232 = por %p230, %p231
      %p233 = scmp.ne.s32.totalorder %s221, %s222
      %p234 = scmp.eq.s32.totalorder %s39, 1
      %p235 = por %p233, %p234
      %p237 = scmp.ne.s32.totalorder %s222, %s236
      %p238 = scmp.eq.s32.totalorder %s39, 0
      %p239 = por %p237, %p238
      %s241 = sadd.s32 %s240, 1
      %p244 = scmp.eq.s32.totalorder %s33, 1
      %p245 = scmp.ne.s32.totalorder %s240, %s242
      %p246 = scmp.eq.s32.totalorder %s33, 0
      %p247 = por %p245, %p246
      %p248 = scmp.ne.s32.totalorder %s240, %s242
      %p249 = scmp.eq.s32.totalorder %s38, 1
      %p250 = por %p248, %p249
      %p251 = scmp.ne.s32.totalorder %s242, %s243
      %p252 = scmp.eq.s32.totalorder %s38, 0
      %p253 = por %p251, %p252
      %p254 = scmp.ne.s32.totalorder %s242, %s243
      %p255 = scmp.eq.s32.totalorder %s39, 1
      %p256 = por %p254, %p255
      %p258 = scmp.ne.s32.totalorder %s243, %s257
      %p259 = scmp.eq.s32.totalorder %s39, 0
      %p260 = por %p258, %p259
      %s262 = sadd.s32 %s261, 1
      %p265 = scmp.eq.s32.totalorder %s33, 1
      %p266 = scmp.ne.s32.totalorder %s261, %s263
      %p267 = scmp.eq.s32.totalorder %s33, 0
      %p268 = por %p266, %p267
      %p269 = scmp.ne.s32.totalorder %s261, %s263
      %p270 = scmp.eq.s32.totalorder %s38, 1
      %p271 = por %p269, %p270
      %p272 = scmp.ne.s32.totalorder %s263, %s264
      %p273 = scmp.eq.s32.totalorder %s38, 0
      %p274 = por %p272, %p273
      %p275 = scmp.ne.s32.totalorder %s263, %s264
      %p276 = scmp.eq.s32.totalorder %s39, 1
      %p277 = por %p275, %p276
      %p279 = scmp.ne.s32.totalorder %s264, %s278
      %p280 = scmp.eq.s32.totalorder %s39, 0
      %p281 = por %p279, %p280
      %s283 = sadd.s32 %s282, 1
      %p286 = scmp.eq.s32.totalorder %s33, 1
      %p287 = scmp.ne.s32.totalorder %s282, %s284
      %p288 = scmp.eq.s32.totalorder %s33, 0
      %p289 = por %p287, %p288
      %p290 = scmp.ne.s32.totalorder %s282, %s284
      %p291 = scmp.eq.s32.totalorder %s38, 1
      %p292 = por %p290, %p291
      %p293 = scmp.ne.s32.totalorder %s284, %s285
      %p294 = scmp.eq.s32.totalorder %s38, 0
      %p295 = por %p293, %p294
      %p296 = scmp.ne.s32.totalorder %s284, %s285
      %p297 = scmp.eq.s32.totalorder %s39, 1
      %p298 = por %p296, %p297
      %p300 = scmp.ne.s32.totalorder %s285, %s299
      %p301 = scmp.eq.s32.totalorder %s39, 0
      %p302 = por %p300, %p301
      %s304 = sadd.s32 %s303, 1
      %p307 = scmp.eq.s32.totalorder %s33, 1
      %p308 = scmp.ne.s32.totalorder %s303, %s305
      %p309 = scmp.eq.s32.totalorder %s33, 0
      %p310 = por %p308, %p309
      %p311 = scmp.ne.s32.totalorder %s303, %s305
      %p312 = scmp.eq.s32.totalorder %s38, 1
      %p313 = por %p311, %p312
      %p314 = scmp.ne.s32.totalorder %s305, %s306
      %p315 = scmp.eq.s32.totalorder %s38, 0
      %p316 = por %p314, %p315
      %p317 = scmp.ne.s32.totalorder %s305, %s306
      %p318 = scmp.eq.s32.totalorder %s39, 1
      %p319 = por %p317, %p318
      %p321 = scmp.ne.s32.totalorder %s306, %s320
      %p322 = scmp.eq.s32.totalorder %s39, 0
      %p323 = por %p321, %p322
      %s325 = sadd.s32 %s324, 1
      %p328 = scmp.eq.s32.totalorder %s33, 1
      %p329 = scmp.ne.s32.totalorder %s324, %s326
      %p330 = scmp.eq.s32.totalorder %s33, 0
      %p331 = por %p329, %p330
      %p332 = scmp.ne.s32.totalorder %s324, %s326
      %p333 = scmp.eq.s32.totalorder %s38, 1
      %p334 = por %p332, %p333
      %p335 = scmp.ne.s32.totalorder %s326, %s327
      %p336 = scmp.eq.s32.totalorder %s38, 0
      %p337 = por %p335, %p336
      %p338 = scmp.ne.s32.totalorder %s326, %s327
      %p339 = scmp.eq.s32.totalorder %s39, 1
      %p340 = por %p338, %p339
      %p342 = scmp.ne.s32.totalorder %s327, %s341
      %p343 = scmp.eq.s32.totalorder %s39, 0
      %p344 = por %p342, %p343
      %s346 = sadd.s32 %s345, 1
      %p349 = scmp.eq.s32.totalorder %s33, 1
      %p350 = scmp.ne.s32.totalorder %s345, %s347
      %p351 = scmp.eq.s32.totalorder %s33, 0
      %p352 = por %p350, %p351
      %p353 = scmp.ne.s32.totalorder %s345, %s347
      %p354 = scmp.eq.s32.totalorder %s38, 1
      %p355 = por %p353, %p354
      %p356 = scmp.ne.s32.totalorder %s347, %s348
      %p357 = scmp.eq.s32.totalorder %s38, 0
      %p358 = por %p356, %p357
      %p359 = scmp.ne.s32.totalorder %s347, %s348
      %p360 = scmp.eq.s32.totalorder %s39, 1
      %p361 = por %p359, %p360
      %p363 = scmp.ne.s32.totalorder %s348, %s362
      %p364 = scmp.eq.s32.totalorder %s39, 0
      %p365 = por %p363, %p364
      %s367 = sadd.s32 %s366, 1
      %p370 = scmp.eq.s32.totalorder %s33, 1
      %p371 = scmp.ne.s32.totalorder %s366, %s368
      %p372 = scmp.eq.s32.totalorder %s33, 0
      %p373 = por %p371, %p372
      %p374 = scmp.ne.s32.totalorder %s366, %s368
      %p375 = scmp.eq.s32.totalorder %s38, 1
      %p376 = por %p374, %p375
      %p377 = scmp.ne.s32.totalorder %s368, %s369
      %p378 = scmp.eq.s32.totalorder %s38, 0
      %p379 = por %p377, %p378
      %p380 = scmp.ne.s32.totalorder %s368, %s369
      %p381 = scmp.eq.s32.totalorder %s39, 1
      %p382 = por %p380, %p381
      %p384 = scmp.ne.s32.totalorder %s369, %s383
      %p385 = scmp.eq.s32.totalorder %s39, 0
      %p386 = por %p384, %p385
      %s388 = sadd.s32 %s387, 1
      %p391 = scmp.eq.s32.totalorder %s33, 1
      %p392 = scmp.ne.s32.totalorder %s387, %s389
      %p393 = scmp.eq.s32.totalorder %s33, 0
      %p394 = por %p392, %p393
      %p395 = scmp.ne.s32.totalorder %s387, %s389
      %p396 = scmp.eq.s32.totalorder %s38, 1
      %p397 = por %p395, %p396
      %p398 = scmp.ne.s32.totalorder %s389, %s390
      %p399 = scmp.eq.s32.totalorder %s38, 0
      %p400 = por %p398, %p399
      %p401 = scmp.ne.s32.totalorder %s389, %s390
      %p402 = scmp.eq.s32.totalorder %s39, 1
      %p403 = por %p401, %p402
      %p405 = scmp.ne.s32.totalorder %s390, %s404
      %p406 = scmp.eq.s32.totalorder %s39, 0
      %p407 = por %p405, %p406
      %s409 = sadd.s32 %s408, 1
      %p412 = scmp.eq.s32.totalorder %s33, 1
      %p413 = scmp.ne.s32.totalorder %s408, %s410
      %p414 = scmp.eq.s32.totalorder %s33, 0
      %p415 = por %p413, %p414
      %p416 = scmp.ne.s32.totalorder %s408, %s410
      %p417 = scmp.eq.s32.totalorder %s38, 1
      %p418 = por %p416, %p417
      %p419 = scmp.ne.s32.totalorder %s410, %s411
      %p420 = scmp.eq.s32.totalorder %s38, 0
      %p421 = por %p419, %p420
      %p422 = scmp.ne.s32.totalorder %s410, %s411
      %p423 = scmp.eq.s32.totalorder %s39, 1
      %p424 = por %p422, %p423
      %p426 = scmp.ne.s32.totalorder %s411, %s425
      %p427 = scmp.eq.s32.totalorder %s39, 0
      %p428 = por %p426, %p427
      %s430 = sadd.s32 %s429, 1
      %p433 = scmp.eq.s32.totalorder %s33, 1
      %p434 = scmp.ne.s32.totalorder %s429, %s431
      %p435 = scmp.eq.s32.totalorder %s33, 0
      %p436 = por %p434, %p435
      %p437 = scmp.ne.s32.totalorder %s429, %s431
      %p438 = scmp.eq.s32.totalorder %s38, 1
      %p439 = por %p437, %p438
      %p440 = scmp.ne.s32.totalorder %s431, %s432
      %p441 = scmp.eq.s32.totalorder %s38, 0
      %p442 = por %p440, %p441
      %p443 = scmp.ne.s32.totalorder %s431, %s432
      %p444 = scmp.eq.s32.totalorder %s39, 1
      %p445 = por %p443, %p444
      %p447 = scmp.ne.s32.totalorder %s432, %s446
      %p448 = scmp.eq.s32.totalorder %s39, 0
      %p449 = por %p447, %p448
      %s450 = ssub.s32 %s33, %s40
      %p451 = scmp.eq.s32.totalorder %s450, 0
      %s453 = sadd.s32 %s452, 1
      %s454 = scalar_select %p451, %s452, %s453
      %p457 = pneg %p451
      %p458 = scmp.eq.s32.totalorder %s33, 1
      %p459 = por %p457, %p458
      %p460 = scmp.ne.s32.totalorder %s452, %s455
      %p461 = scmp.eq.s32.totalorder %s33, 0
      %p462 = por %p460, %p461
      %p463 = scmp.ne.s32.totalorder %s452, %s455
      %p464 = scmp.eq.s32.totalorder %s38, 1
      %p465 = por %p463, %p464
      %p466 = scmp.ne.s32.totalorder %s455, %s456
      %p467 = scmp.eq.s32.totalorder %s38, 0
      %p468 = por %p466, %p467
      %p469 = scmp.ne.s32.totalorder %s455, %s456
      %p470 = scmp.eq.s32.totalorder %s39, 1
      %p471 = por %p469, %p470
      %p473 = scmp.ne.s32.totalorder %s456, %s472
      %p474 = scmp.eq.s32.totalorder %s39, 0
      %p475 = por %p473, %p474
      %p476 = scmp.le.s32.totalorder 1, %s33
      %p477 = scmp.lt.s32.totalorder %s33, 3
      %p478 = pnand %p476, %p477
      %p479 = pneg %p478
      // Predicated region
      $region9: #{tpu_custom_call.1} parent=5 // pred_check
        _
      $region10: #{tpu_custom_call.1} parent=5 // pred_check_branch
        %481 = sbr.rel (%p478) target = $region12
      $region11: #{tpu_custom_call.1} parent=5 // pred_region
        %s482 = ssub.s32 %s33, 1
        // Predicated region
        $region13: #{tpu_custom_call.1} parent=11 // pred_check
          %p483 = pneg %p106
        $region14: #{tpu_custom_call.1} parent=11 // pred_check_branch
          %485 = sbr.rel (%p483) target = $region16
        $region15: #{tpu_custom_call.1} parent=11 // pred_region
          %487 = vsyncadd [#allocation3], 0
          %s489 = sshll.u32 %s2, 4
          %s490 = int_to_ptr.hbm [resolvable:$true] %s489
          %s491 = sshll.u32 [#allocation2], 4
          %s492 = int_to_ptr.vmem [resolvable:$true] %s491
          %494 = dma.hbm_to_vmem [thread:$0]  %s490, 128, %s492, [#allocation3]
        $region16: #{tpu_custom_call.1} parent=11 // pred_fallthru
          _
        // Predicated region
        $region17: #{tpu_custom_call.1} parent=11 // pred_check
          %p495 = pneg %p127
        $region18: #{tpu_custom_call.1} parent=11 // pred_check_branch
          %497 = sbr.rel (%p495) target = $region20
        $region19: #{tpu_custom_call.1} parent=11 // pred_region
          _
        $region20: #{tpu_custom_call.1} parent=11 // pred_fallthru
          _
        // Predicated region
        $region21: #{tpu_custom_call.1} parent=11 // pred_check
          %p498 = pneg %p148
        $region22: #{tpu_custom_call.1} parent=11 // pred_check_branch
          %500 = sbr.rel (%p498) target = $region24
        $region23: #{tpu_custom_call.1} parent=11 // pred_region
          %502 = vsyncadd [#allocation6], 0
          %s504 = sshll.u32 %s4, 4
          %s505 = int_to_ptr.hbm [resolvable:$true] %s504
          %s506 = sshll.u32 [#allocation5], 4
          %s507 = int_to_ptr.vmem [resolvable:$true] %s506
          %509 = dma.hbm_to_vmem [thread:$0]  %s505, 16, %s507, [#allocation6]
        $region24: #{tpu_custom_call.1} parent=11 // pred_fallthru
          _
        // Predicated region
        $region25: #{tpu_custom_call.1} parent=11 // pred_check
          %p510 = pneg %p169
        $region26: #{tpu_custom_call.1} parent=11 // pred_check_branch
          %512 = sbr.rel (%p510) target = $region28
        $region27: #{tpu_custom_call.1} parent=11 // pred_region
          %514 = vsyncadd [#allocation6], 0
          %s515 = sshll.u32 %s5, 4
          %s516 = int_to_ptr.hbm [resolvable:$true] %s515
          %s517 = sshll.u32 [#allocation7], 4
          %s518 = int_to_ptr.vmem [resolvable:$true] %s517
          %523 = dma.hbm_to_vmem [thread:$0]  %s516, 256, %s518, [#allocation6], 64, 64, 4
        $region28: #{tpu_custom_call.1} parent=11 // pred_fallthru
          _
        // Predicated region
        $region29: #{tpu_custom_call.1} parent=11 // pred_check
          %p524 = pneg %p190
        $region30: #{tpu_custom_call.1} parent=11 // pred_check_branch
          %526 = sbr.rel (%p524) target = $region32
        $region31: #{tpu_custom_call.1} parent=11 // pred_region
          %528 = vsyncadd [#allocation9], 0
          %s530 = sshll.u32 %s6, 4
          %s531 = int_to_ptr.hbm [resolvable:$true] %s530
          %s532 = sshll.u32 [#allocation8], 4
          %s533 = int_to_ptr.vmem [resolvable:$true] %s532
          %535 = dma.hbm_to_vmem [thread:$0]  %s531, 16, %s533, [#allocation9]
        $region32: #{tpu_custom_call.1} parent=11 // pred_fallthru
          _
        // Predicated region
        $region33: #{tpu_custom_call.1} parent=11 // pred_check
          %p536 = pneg %p211
        $region34: #{tpu_custom_call.1} parent=11 // pred_check_branch
          %538 = sbr.rel (%p536) target = $region36
        $region35: #{tpu_custom_call.1} parent=11 // pred_region
          %540 = vsyncadd [#allocation9], 0
          %s541 = sshll.u32 %s7, 4
          %s542 = int_to_ptr.hbm [resolvable:$true] %s541
          %s543 = sshll.u32 [#allocation10], 4
          %s544 = int_to_ptr.vmem [resolvable:$true] %s543
          %549 = dma.hbm_to_vmem [thread:$0]  %s542, 256, %s544, [#allocation9], 64, 64, 4
        $region36: #{tpu_custom_call.1} parent=11 // pred_fallthru
          _
        // Predicated region
        $region37: #{tpu_custom_call.1} parent=11 // pred_check
          %p550 = pneg %p232
        $region38: #{tpu_custom_call.1} parent=11 // pred_check_branch
          %552 = sbr.rel (%p550) target = $region40
        $region39: #{tpu_custom_call.1} parent=11 // pred_region
          %554 = vsyncadd [#allocation12], 0
          %s556 = sshll.u32 %s8, 4
          %s557 = int_to_ptr.hbm [resolvable:$true] %s556
          %s558 = sshll.u32 [#allocation11], 4
          %s559 = int_to_ptr.vmem [resolvable:$true] %s558
          %561 = dma.hbm_to_vmem [thread:$0]  %s557, 16, %s559, [#allocation12]
        $region40: #{tpu_custom_call.1} parent=11 // pred_fallthru
          _
        // Predicated region
        $region41: #{tpu_custom_call.1} parent=11 // pred_check
          %p562 = pneg %p253
        $region42: #{tpu_custom_call.1} parent=11 // pred_check_branch
          %564 = sbr.rel (%p562) target = $region44
        $region43: #{tpu_custom_call.1} parent=11 // pred_region
          %566 = vsyncadd [#allocation12], 0
          %s567 = sshll.u32 %s9, 4
          %s568 = int_to_ptr.hbm [resolvable:$true] %s567
          %s569 = sshll.u32 [#allocation13], 4
          %s570 = int_to_ptr.vmem [resolvable:$true] %s569
          %575 = dma.hbm_to_vmem [thread:$0]  %s568, 256, %s570, [#allocation12], 64, 64, 4
        $region44: #{tpu_custom_call.1} parent=11 // pred_fallthru
          _
        // Predicated region
        $region45: #{tpu_custom_call.1} parent=11 // pred_check
          %p576 = pneg %p274
        $region46: #{tpu_custom_call.1} parent=11 // pred_check_branch
          %578 = sbr.rel (%p576) target = $region48
        $region47: #{tpu_custom_call.1} parent=11 // pred_region
          _
        $region48: #{tpu_custom_call.1} parent=11 // pred_fallthru
          _
        // Predicated region
        $region49: #{tpu_custom_call.1} parent=11 // pred_check
          %p579 = pneg %p295
        $region50: #{tpu_custom_call.1} parent=11 // pred_check_branch
          %581 = sbr.rel (%p579) target = $region52
        $region51: #{tpu_custom_call.1} parent=11 // pred_region
          %583 = vsyncadd [#allocation15], 0
          %s584 = sshll.u32 %s11, 4
          %s585 = int_to_ptr.hbm [resolvable:$true] %s584
          %s586 = sshll.u32 [#allocation14], 4
          %s587 = int_to_ptr.vmem [resolvable:$true] %s586
          %592 = dma.hbm_to_vmem [thread:$0]  %s585, 256, %s587, [#allocation15], 64, 64, 4
        $region52: #{tpu_custom_call.1} parent=11 // pred_fallthru
          _
        // Predicated region
        $region53: #{tpu_custom_call.1} parent=11 // pred_check
          %p593 = pneg %p316
        $region54: #{tpu_custom_call.1} parent=11 // pred_check_branch
          %595 = sbr.rel (%p593) target = $region56
        $region55: #{tpu_custom_call.1} parent=11 // pred_region
          _
        $region56: #{tpu_custom_call.1} parent=11 // pred_fallthru
          _
        // Predicated region
        $region57: #{tpu_custom_call.1} parent=11 // pred_check
          %p596 = pneg %p337
        $region58: #{tpu_custom_call.1} parent=11 // pred_check_branch
          %598 = sbr.rel (%p596) target = $region60
        $region59: #{tpu_custom_call.1} parent=11 // pred_region
          %600 = vsyncadd [#allocation15], 0
          %s601 = sshll.u32 %s13, 4
          %s602 = int_to_ptr.hbm [resolvable:$true] %s601
          %s603 = sshll.u32 [#allocation16], 4
          %s604 = int_to_ptr.vmem [resolvable:$true] %s603
          %609 = dma.hbm_to_vmem [thread:$0]  %s602, 256, %s604, [#allocation15], 64, 64, 4
        $region60: #{tpu_custom_call.1} parent=11 // pred_fallthru
          _
        // Predicated region
        $region61: #{tpu_custom_call.1} parent=11 // pred_check
          %p610 = pneg %p358
        $region62: #{tpu_custom_call.1} parent=11 // pred_check_branch
          %612 = sbr.rel (%p610) target = $region64
        $region63: #{tpu_custom_call.1} parent=11 // pred_region
          _
        $region64: #{tpu_custom_call.1} parent=11 // pred_fallthru
          _
        // Predicated region
        $region65: #{tpu_custom_call.1} parent=11 // pred_check
          %p613 = pneg %p379
        $region66: #{tpu_custom_call.1} parent=11 // pred_check_branch
          %615 = sbr.rel (%p613) target = $region68
        $region67: #{tpu_custom_call.1} parent=11 // pred_region
          _
        $region68: #{tpu_custom_call.1} parent=11 // pred_fallthru
          _
        // Predicated region
        $region69: #{tpu_custom_call.1} parent=11 // pred_check
          %p616 = pneg %p400
        $region70: #{tpu_custom_call.1} parent=11 // pred_check_branch
          %618 = sbr.rel (%p616) target = $region72
        $region71: #{tpu_custom_call.1} parent=11 // pred_region
          _
        $region72: #{tpu_custom_call.1} parent=11 // pred_fallthru
          _
        // Predicated region
        $region73: #{tpu_custom_call.1} parent=11 // pred_check
          %p619 = pneg %p421
        $region74: #{tpu_custom_call.1} parent=11 // pred_check_branch
          %621 = sbr.rel (%p619) target = $region76
        $region75: #{tpu_custom_call.1} parent=11 // pred_region
          _
        $region76: #{tpu_custom_call.1} parent=11 // pred_fallthru
          _
        // Predicated region
        $region77: #{tpu_custom_call.1} parent=11 // pred_check
          %p622 = pneg %p442
        $region78: #{tpu_custom_call.1} parent=11 // pred_check_branch
          %624 = sbr.rel (%p622) target = $region80
        $region79: #{tpu_custom_call.1} parent=11 // pred_region
          _
        $region80: #{tpu_custom_call.1} parent=11 // pred_fallthru
          _
      $region12: #{tpu_custom_call.1} parent=5 // pred_fallthru
        _
      %p625 = scmp.lt.s32.totalorder %s33, 2
      // Predicated region
      $region81: #{tpu_custom_call.1} parent=5 // pred_check
        %p626 = pneg %p625
      $region82: #{tpu_custom_call.1} parent=5 // pred_check_branch
        %628 = sbr.rel (%p626) target = $region84
      $region83: #{tpu_custom_call.1} parent=5 // pred_region
        // Predicated region
        $region85: #{tpu_custom_call.1} parent=83 // pred_check
          %p629 = pneg %p53
        $region86: #{tpu_custom_call.1} parent=83 // pred_check_branch
          %631 = sbr.rel (%p629) target = $region88
        $region87: #{tpu_custom_call.1} parent=83 // pred_region
          %p632 = scmp.lt.s32.totalorder %s33, 1
          %s633 = scalar_select %p632, %s33, 1
          %s634 = smul.addr %s633, 8
          %s635 = scalar_lea.vmem %s0, %s634
        $region88: #{tpu_custom_call.1} parent=83 // pred_fallthru
          _
        // Predicated region
        $region89: #{tpu_custom_call.1} parent=83 // pred_check
          %p636 = pneg %p79
        $region90: #{tpu_custom_call.1} parent=83 // pred_check_branch
          %638 = sbr.rel (%p636) target = $region92
        $region91: #{tpu_custom_call.1} parent=83 // pred_region
          %p639 = scmp.lt.s32.totalorder %s33, 1
          %s640 = scalar_select %p639, %s33, 1
          %s641 = smul.addr %s640, 8
          %s642 = scalar_lea.vmem %s1, %s641
        $region92: #{tpu_custom_call.1} parent=83 // pred_fallthru
          _
      $region84: #{tpu_custom_call.1} parent=5 // pred_fallthru
        _
      %p643 = scmp.le.s32.totalorder 1, %s33
      %p644 = scmp.lt.s32.totalorder %s33, 3
      %p645 = pnand %p643, %p644
      %p646 = pneg %p645
      // Predicated region
      $region93: #{tpu_custom_call.1} parent=5 // pred_check
        _
      $region94: #{tpu_custom_call.1} parent=5 // pred_check_branch
        %648 = sbr.rel (%p645) target = $region96
      $region95: #{tpu_custom_call.1} parent=5 // pred_region
        %s649 = ssub.s32 %s33, 1
        // Predicated region
        $region97: #{tpu_custom_call.1} parent=95 // pred_check
          %p650 = pneg %p106
        $region98: #{tpu_custom_call.1} parent=95 // pred_check_branch
          %652 = sbr.rel (%p650) target = $region100
        $region99: #{tpu_custom_call.1} parent=95 // pred_region
          %654 = dma.done [#allocation3], 128
        $region100: #{tpu_custom_call.1} parent=95 // pred_fallthru
          _
        // Predicated region
        $region101: #{tpu_custom_call.1} parent=95 // pred_check
          %p655 = pneg %p148
        $region102: #{tpu_custom_call.1} parent=95 // pred_check_branch
          %657 = sbr.rel (%p655) target = $region104
        $region103: #{tpu_custom_call.1} parent=95 // pred_region
          %659 = dma.done [#allocation6], 16
        $region104: #{tpu_custom_call.1} parent=95 // pred_fallthru
          _
        // Predicated region
        $region105: #{tpu_custom_call.1} parent=95 // pred_check
          %p660 = pneg %p169
        $region106: #{tpu_custom_call.1} parent=95 // pred_check_branch
          %662 = sbr.rel (%p660) target = $region108
        $region107: #{tpu_custom_call.1} parent=95 // pred_region
          %664 = dma.done [#allocation6], 256
        $region108: #{tpu_custom_call.1} parent=95 // pred_fallthru
          _
        // Predicated region
        $region109: #{tpu_custom_call.1} parent=95 // pred_check
          %p665 = pneg %p190
        $region110: #{tpu_custom_call.1} parent=95 // pred_check_branch
          %667 = sbr.rel (%p665) target = $region112
        $region111: #{tpu_custom_call.1} parent=95 // pred_region
          %669 = dma.done [#allocation9], 16
        $region112: #{tpu_custom_call.1} parent=95 // pred_fallthru
          _
        // Predicated region
        $region113: #{tpu_custom_call.1} parent=95 // pred_check
          %p670 = pneg %p211
        $region114: #{tpu_custom_call.1} parent=95 // pred_check_branch
          %672 = sbr.rel (%p670) target = $region116
        $region115: #{tpu_custom_call.1} parent=95 // pred_region
          %674 = dma.done [#allocation9], 256
        $region116: #{tpu_custom_call.1} parent=95 // pred_fallthru
          _
        // Predicated region
        $region117: #{tpu_custom_call.1} parent=95 // pred_check
          %p675 = pneg %p232
        $region118: #{tpu_custom_call.1} parent=95 // pred_check_branch
          %677 = sbr.rel (%p675) target = $region120
        $region119: #{tpu_custom_call.1} parent=95 // pred_region
          %679 = dma.done [#allocation12], 16
        $region120: #{tpu_custom_call.1} parent=95 // pred_fallthru
          _
        // Predicated region
        $region121: #{tpu_custom_call.1} parent=95 // pred_check
          %p680 = pneg %p253
        $region122: #{tpu_custom_call.1} parent=95 // pred_check_branch
          %682 = sbr.rel (%p680) target = $region124
        $region123: #{tpu_custom_call.1} parent=95 // pred_region
          %684 = dma.done [#allocation12], 256
        $region124: #{tpu_custom_call.1} parent=95 // pred_fallthru
          _
        // Predicated region
        $region125: #{tpu_custom_call.1} parent=95 // pred_check
          %p685 = pneg %p295
        $region126: #{tpu_custom_call.1} parent=95 // pred_check_branch
          %687 = sbr.rel (%p685) target = $region128
        $region127: #{tpu_custom_call.1} parent=95 // pred_region
          %689 = dma.done [#allocation15], 256
        $region128: #{tpu_custom_call.1} parent=95 // pred_fallthru
          _
        // Predicated region
        $region129: #{tpu_custom_call.1} parent=95 // pred_check
          %p690 = pneg %p337
        $region130: #{tpu_custom_call.1} parent=95 // pred_check_branch
          %692 = sbr.rel (%p690) target = $region132
        $region131: #{tpu_custom_call.1} parent=95 // pred_region
          %694 = dma.done [#allocation15], 256
        $region132: #{tpu_custom_call.1} parent=95 // pred_fallthru
          _
        %p695 = scmp.lt.s32.totalorder %s38, 1
        %s696 = scalar_select %p695, %s38, 1
        %s697 = smul.addr %s696, 8
        %s698 = scalar_lea.vmem %s0, %s697
        %p699 = pneg %p59
        %p700 = pneg %p56
        %p701 = scmp.lt.s32.totalorder %s38, 1
        %s702 = scalar_select %p701, %s38, 1
        %s703 = smul.addr %s702, 8
        %s704 = scalar_lea.vmem %s1, %s703
        %p705 = pneg %p85
        %p706 = pneg %p82
        %p707 = pneg %p106
        %p708 = pneg %p103
        %p709 = pneg %p127
        %p710 = pneg %p124
        %p711 = pneg %p148
        %p712 = pneg %p145
        %p713 = pneg %p169
        %p714 = pneg %p166
        %p715 = pneg %p190
        %p716 = pneg %p187
        %p717 = pneg %p211
        %p718 = pneg %p208
        %p719 = pneg %p232
        %p720 = pneg %p229
        %p721 = pneg %p253
        %p722 = pneg %p250
        %p723 = pneg %p274
        %p724 = pneg %p271
        %p725 = pneg %p295
        %p726 = pneg %p292
        %p727 = pneg %p316
        %p728 = pneg %p313
        %p729 = pneg %p337
        %p730 = pneg %p334
        %p731 = pneg %p358
        %p732 = pneg %p355
        %p733 = pneg %p379
        %p734 = pneg %p376
        %p735 = pneg %p400
        %p736 = pneg %p397
        %p737 = pneg %p421
        %p738 = pneg %p418
        %p739 = pneg %p442
        %p740 = pneg %p439
        %p741 = pneg %p468
        %p742 = pneg %p465
        %s743 = sand.u32 %s455, 1
        %s744 = scalar_lea.sflag [#allocation4], %s743
        %s745 = sand.u32 %s455, 1
        %s746 = smul.addr %s745, 8
        %s747 = scalar_lea.vmem [#allocation17], %s746
        %p748 = scmp.lt.s32.totalorder %s38, 1
        %s749 = scalar_select %p748, %s38, 1
        %s750 = smul.addr %s749, 8
        %s751 = scalar_lea.vmem %s0, %s750
        %p752 = scmp.lt.s32.totalorder %s38, 1
        %s753 = scalar_select %p752, %s38, 1
        %s754 = smul.addr %s753, 8
        %s755 = scalar_lea.vmem %s1, %s754
        %v757 = vld [vmem:[%s751] sm:$0xff]
        %v758 = vld [vmem:[%s755] sm:$0xff]
        %v759 = vld [vmem:[#allocation2] sm:$0xff]
        %vm760 = vcmp.gt.f32.partialorder %v759, 0.0
        %v761 = vsel %vm760, 0.0, -1e+30
        %v762 = vpack.c.bf16 %v757, %v757
        %v763 = vld [vmem:[%s3] sm:$0xf]
        %v764 = vld [vmem:[%s3 + $0x4] sm:$0xf]
        %v765 = vld [vmem:[%s3 + $0x8] sm:$0xf]
        %v766 = vld [vmem:[%s3 + $0xc] sm:$0xf]
        %v767 = vld [vmem:[#allocation5] sm:$0x1]
        %v769 = vperm.slane %v767, 0
        %v775 = vunpack.c.l.b16 %v763
        %v776 = vunpack.c.l.b16 %v764
        %v777 = vunpack.c.l.b16 %v765
        %v778 = vunpack.c.l.b16 %v766
        %v779 = vpack.c.b16 %v776, %v775
        %v780 = vpack.c.b16 %v778, %v777
        %vm783 = vcmask 261120
        %v785 = vsel %vm783, %v762, 0
        %787 = vmatpush.bf16.msra.mxu0 0
        %788 = vmatpush.bf16.msra.mxu0 0
        %789 = vmatpush.bf16.msra.mxu0 0
        %790 = vmatpush.bf16.msra.mxu0 0
        %791 = vmatpush.bf16.msra.mxu0 0
        %792 = vmatpush.bf16.msra.mxu0 0
        %793 = vmatpush.bf16.msra.mxu0 %v780
        %794 = vmatpush.bf16.msra.mxu0 %v779
        %795 = vmatmul.bf16.gmra.mxu0 %v785
        %v796 = vpop.f32.mrf.mxu0
        %v797 = vadd.f32 %v769, %v796
        %v798 = vpop.f32.mrf.mxu0
        %799 = vdwg.mxu0
        %801 = vrot.lane.b32.xlu0 %v797, 120
        %v802 = vpop.permute.xlu0 %801
        %804 = vrot.lane.b32.xlu0 %v797, 112
        %v805 = vpop.permute.xlu0 %804
        %807 = vrot.lane.b32.xlu0 %v797, 104
        %v808 = vpop.permute.xlu0 %807
        %810 = vrot.lane.b32.xlu0 %v797, 96
        %v811 = vpop.permute.xlu0 %810
        %813 = vrot.lane.b32.xlu0 %v797, 88
        %v814 = vpop.permute.xlu0 %813
        %816 = vrot.lane.b32.xlu0 %v797, 80
        %v817 = vpop.permute.xlu0 %816
        %819 = vrot.lane.b32.xlu0 %v797, 72
        %v820 = vpop.permute.xlu0 %819
        %822 = vrot.lane.b32.xlu0 %v797, 64
        %v823 = vpop.permute.xlu0 %822
        %825 = vrot.lane.b32.xlu0 %v797, 56
        %v826 = vpop.permute.xlu0 %825
        %828 = vrot.lane.b32.xlu0 %v797, 48
        %v829 = vpop.permute.xlu0 %828
        %831 = vrot.lane.b32.xlu0 %v797, 40
        %v832 = vpop.permute.xlu0 %831
        %v834 = vrot.slane %v805, 4
        %vm835 = vcmask 1047556
        %v836 = vsel %vm835, %v834, %v797
        %v837 = vrot.slane %v797, 4
        %v838 = vsel %vm835, %v805, %v837
        %v840 = vunpack.c.l.s4 1983009808
        %v841 = vunpack.c.0.s8 %v840
        %v842 = vperm.slane %v836, %v841
        %v844 = vunpack.c.l.s4 1983009808
        %v845 = vunpack.c.0.s8 %v844
        %v846 = vperm.slane %v838, %v845
        %v847 = vrot.slane %v808, 4
        %v848 = vsel %vm835, %v847, %v802
        %v849 = vrot.slane %v802, 4
        %v850 = vsel %vm835, %v808, %v849
        %v852 = vunpack.c.l.s4 1983009808
        %v853 = vunpack.c.0.s8 %v852
        %v854 = vperm.slane %v848, %v853
        %v856 = vunpack.c.l.s4 1983009808
        %v857 = vunpack.c.0.s8 %v856
        %v858 = vperm.slane %v850, %v857
        %v859 = vrot.slane %v817, 4
        %v860 = vsel %vm835, %v859, %v811
        %v861 = vrot.slane %v811, 4
        %v862 = vsel %vm835, %v817, %v861
        %v864 = vunpack.c.l.s4 1983009808
        %v865 = vunpack.c.0.s8 %v864
        %v866 = vperm.slane %v860, %v865
        %v868 = vunpack.c.l.s4 1983009808
        %v869 = vunpack.c.0.s8 %v868
        %v870 = vperm.slane %v862, %v869
        %v871 = vrot.slane %v820, 4
        %v872 = vsel %vm835, %v871, %v814
        %v873 = vrot.slane %v814, 4
        %v874 = vsel %vm835, %v820, %v873
        %v876 = vunpack.c.l.s4 1983009808
        %v877 = vunpack.c.0.s8 %v876
        %v878 = vperm.slane %v872, %v877
        %v880 = vunpack.c.l.s4 1983009808
        %v881 = vunpack.c.0.s8 %v880
        %v882 = vperm.slane %v874, %v881
        %v883 = vrot.slane %v854, 4
        %v884 = vsel %vm835, %v883, %v842
        %v885 = vrot.slane %v842, 4
        %v886 = vsel %vm835, %v854, %v885
        %v888 = vunpack.c.l.s4 1934713408
        %v889 = vunpack.c.0.s8 %v888
        %v890 = vperm.slane %v884, %v889
        %v892 = vunpack.c.l.s4 1934713408
        %v893 = vunpack.c.0.s8 %v892
        %v894 = vperm.slane %v886, %v893
        %v895 = vrot.slane %v858, 4
        %v896 = vsel %vm835, %v895, %v846
        %v897 = vrot.slane %v846, 4
        %v898 = vsel %vm835, %v858, %v897
        %v900 = vunpack.c.l.s4 1934713408
        %v901 = vunpack.c.0.s8 %v900
        %v902 = vperm.slane %v896, %v901
        %v904 = vunpack.c.l.s4 1934713408
        %v905 = vunpack.c.0.s8 %v904
        %v906 = vperm.slane %v898, %v905
        %v907 = vrot.slane %v878, 4
        %v908 = vsel %vm835, %v907, %v866
        %v909 = vrot.slane %v866, 4
        %v910 = vsel %vm835, %v878, %v909
        %v912 = vunpack.c.l.s4 1934713408
        %v913 = vunpack.c.0.s8 %v912
        %v914 = vperm.slane %v908, %v913
        %v916 = vunpack.c.l.s4 1934713408
        %v917 = vunpack.c.0.s8 %v916
        %v918 = vperm.slane %v910, %v917
        %v919 = vrot.slane %v882, 4
        %v920 = vsel %vm835, %v919, %v870
        %v921 = vrot.slane %v870, 4
        %v922 = vsel %vm835, %v882, %v921
        %v924 = vunpack.c.l.s4 1934713408
        %v925 = vunpack.c.0.s8 %v924
        %v926 = vperm.slane %v920, %v925
        %v928 = vunpack.c.l.s4 1934713408
        %v929 = vunpack.c.0.s8 %v928
        %v930 = vperm.slane %v922, %v929
        %v931 = vrot.slane %v914, 4
        %v932 = vsel %vm835, %v931, %v890
        %v933 = vrot.slane %v890, 4
        %v934 = vsel %vm835, %v914, %v933
        %v935 = vrot.slane %v918, 4
        %v936 = vsel %vm835, %v935, %v894
        %v937 = vrot.slane %v894, 4
        %v938 = vsel %vm835, %v918, %v937
        %v939 = vrot.slane %v926, 4
        %v940 = vsel %vm835, %v939, %v902
        %v941 = vrot.slane %v902, 4
        %v942 = vsel %vm835, %v926, %v941
        %v943 = vrot.slane %v930, 4
        %v944 = vsel %vm835, %v943, %v906
        %v945 = vrot.slane %v906, 4
        %v946 = vsel %vm835, %v930, %v945
        %v947 = vrot.slane %v829, 4
        %v948 = vsel %vm835, %v947, %v823
        %v949 = vrot.slane %v823, 4
        %v950 = vsel %vm835, %v829, %v949
        %v952 = vunpack.c.l.s4 1983009808
        %v953 = vunpack.c.0.s8 %v952
        %v954 = vperm.slane %v948, %v953
        %v956 = vunpack.c.l.s4 1983009808
        %v957 = vunpack.c.0.s8 %v956
        %v958 = vperm.slane %v950, %v957
        %v959 = vrot.slane %v832, 4
        %v960 = vsel %vm835, %v959, %v826
        %v961 = vrot.slane %v826, 4
        %v962 = vsel %vm835, %v832, %v961
        %v964 = vunpack.c.l.s4 1983009808
        %v965 = vunpack.c.0.s8 %v964
        %v966 = vperm.slane %v960, %v965
        %v968 = vunpack.c.l.s4 1983009808
        %v969 = vunpack.c.0.s8 %v968
        %v970 = vperm.slane %v962, %v969
        %v971 = vrot.slane %v966, 4
        %v972 = vsel %vm835, %v971, %v954
        %v973 = vrot.slane %v954, 4
        %v974 = vsel %vm835, %v966, %v973
        %v976 = vunpack.c.l.s4 1934713408
        %v977 = vunpack.c.0.s8 %v976
        %v978 = vperm.slane %v972, %v977
        %v980 = vunpack.c.l.s4 1934713408
        %v981 = vunpack.c.0.s8 %v980
        %v982 = vperm.slane %v974, %v981
        %v983 = vrot.slane %v970, 4
        %v984 = vsel %vm835, %v983, %v958
        %v985 = vrot.slane %v958, 4
        %v986 = vsel %vm835, %v970, %v985
        %v988 = vunpack.c.l.s4 1934713408
        %v989 = vunpack.c.0.s8 %v988
        %v990 = vperm.slane %v984, %v989
        %v992 = vunpack.c.l.s4 1934713408
        %v993 = vunpack.c.0.s8 %v992
        %v994 = vperm.slane %v986, %v993
        %v995 = vrot.slane %v978, 4
        %v996 = vsel %vm835, 0.0, %v995
        %v997 = vrot.slane %v982, 4
        %v998 = vsel %vm835, 0.0, %v997
        %v999 = vrot.slane %v990, 4
        %v1000 = vsel %vm835, 0.0, %v999
        %v1001 = vrot.slane %v994, 4
        %v1002 = vsel %vm835, 0.0, %v1001
        %v1003 = vrot.slane %v936, 4
        %v1004 = vsel %vm835, %v1003, %v932
        %v1005 = vrot.slane %v932, 4
        %v1006 = vsel %vm835, %v936, %v1005
        %v1008 = vunpack.c.l.s4 1983009808
        %v1009 = vunpack.c.0.s8 %v1008
        %v1010 = vperm.slane %v1004, %v1009
        %v1012 = vunpack.c.l.s4 1983009808
        %v1013 = vunpack.c.0.s8 %v1012
        %v1014 = vperm.slane %v1006, %v1013
        %v1015 = vrot.slane %v938, 4
        %v1016 = vsel %vm835, %v1015, %v934
        %v1017 = vrot.slane %v934, 4
        %v1018 = vsel %vm835, %v938, %v1017
        %v1020 = vunpack.c.l.s4 1983009808
        %v1021 = vunpack.c.0.s8 %v1020
        %v1022 = vperm.slane %v1016, %v1021
        %v1024 = vunpack.c.l.s4 1983009808
        %v1025 = vunpack.c.0.s8 %v1024
        %v1026 = vperm.slane %v1018, %v1025
        %v1027 = vrot.slane %v944, 4
        %v1028 = vsel %vm835, %v1027, %v940
        %v1029 = vrot.slane %v940, 4
        %v1030 = vsel %vm835, %v944, %v1029
        %v1032 = vunpack.c.l.s4 1983009808
        %v1033 = vunpack.c.0.s8 %v1032
        %v1034 = vperm.slane %v1028, %v1033
        %v1036 = vunpack.c.l.s4 1983009808
        %v1037 = vunpack.c.0.s8 %v1036
        %v1038 = vperm.slane %v1030, %v1037
        %v1039 = vrot.slane %v946, 4
        %v1040 = vsel %vm835, %v1039, %v942
        %v1041 = vrot.slane %v942, 4
        %v1042 = vsel %vm835, %v946, %v1041
        %v1044 = vunpack.c.l.s4 1983009808
        %v1045 = vunpack.c.0.s8 %v1044
        %v1046 = vperm.slane %v1040, %v1045
        %v1048 = vunpack.c.l.s4 1983009808
        %v1049 = vunpack.c.0.s8 %v1048
        %v1050 = vperm.slane %v1042, %v1049
        %v1051 = vrot.slane %v1022, 4
        %v1052 = vsel %vm835, %v1051, %v1010
        %v1053 = vrot.slane %v1010, 4
        %v1054 = vsel %vm835, %v1022, %v1053
        %v1056 = vunpack.c.l.s4 1934713408
        %v1057 = vunpack.c.0.s8 %v1056
        %v1058 = vperm.slane %v1052, %v1057
        %v1060 = vunpack.c.l.s4 1934713408
        %v1061 = vunpack.c.0.s8 %v1060
        %v1062 = vperm.slane %v1054, %v1061
        %v1063 = vrot.slane %v1026, 4
        %v1064 = vsel %vm835, %v1063, %v1014
        %v1065 = vrot.slane %v1014, 4
        %v1066 = vsel %vm835, %v1026, %v1065
        %v1068 = vunpack.c.l.s4 1934713408
        %v1069 = vunpack.c.0.s8 %v1068
        %v1070 = vperm.slane %v1064, %v1069
        %v1072 = vunpack.c.l.s4 1934713408
        %v1073 = vunpack.c.0.s8 %v1072
        %v1074 = vperm.slane %v1066, %v1073
        %v1075 = vrot.slane %v1046, 4
        %v1076 = vsel %vm835, %v1075, %v1034
        %v1077 = vrot.slane %v1034, 4
        %v1078 = vsel %vm835, %v1046, %v1077
        %v1080 = vunpack.c.l.s4 1934713408
        %v1081 = vunpack.c.0.s8 %v1080
        %v1082 = vperm.slane %v1076, %v1081
        %v1084 = vunpack.c.l.s4 1934713408
        %v1085 = vunpack.c.0.s8 %v1084
        %v1086 = vperm.slane %v1078, %v1085
        %v1087 = vrot.slane %v1050, 4
        %v1088 = vsel %vm835, %v1087, %v1038
        %v1089 = vrot.slane %v1038, 4
        %v1090 = vsel %vm835, %v1050, %v1089
        %v1092 = vunpack.c.l.s4 1934713408
        %v1093 = vunpack.c.0.s8 %v1092
        %v1094 = vperm.slane %v1088, %v1093
        %v1096 = vunpack.c.l.s4 1934713408
        %v1097 = vunpack.c.0.s8 %v1096
        %v1098 = vperm.slane %v1090, %v1097
        %v1099 = vrot.slane %v1082, 4
        %v1100 = vsel %vm835, %v1099, %v1058
        %v1101 = vrot.slane %v1058, 4
        %v1102 = vsel %vm835, %v1082, %v1101
        %v1103 = vrot.slane %v1086, 4
        %v1104 = vsel %vm835, %v1103, %v1062
        %v1105 = vrot.slane %v1062, 4
        %v1106 = vsel %vm835, %v1086, %v1105
        %v1107 = vrot.slane %v1094, 4
        %v1108 = vsel %vm835, %v1107, %v1070
        %v1109 = vrot.slane %v1070, 4
        %v1110 = vsel %vm835, %v1094, %v1109
        %v1111 = vrot.slane %v1098, 4
        %v1112 = vsel %vm835, %v1111, %v1074
        %v1113 = vrot.slane %v1074, 4
        %v1114 = vsel %vm835, %v1098, %v1113
        %v1115 = vsel %vm835, %v997, %v978
        %v1117 = vunpack.c.l.s4 1983009808
        %v1118 = vunpack.c.0.s8 %v1117
        %v1119 = vperm.slane %v1115, %v1118
        %v1120 = vrot.slane %v998, 4
        %v1121 = vsel %vm835, %v1120, %v996
        %v1123 = vunpack.c.l.s4 1983009808
        %v1124 = vunpack.c.0.s8 %v1123
        %v1125 = vperm.slane %v1121, %v1124
        %v1126 = vsel %vm835, %v1001, %v990
        %v1128 = vunpack.c.l.s4 1983009808
        %v1129 = vunpack.c.0.s8 %v1128
        %v1130 = vperm.slane %v1126, %v1129
        %v1131 = vrot.slane %v1002, 4
        %v1132 = vsel %vm835, %v1131, %v1000
        %v1134 = vunpack.c.l.s4 1983009808
        %v1135 = vunpack.c.0.s8 %v1134
        %v1136 = vperm.slane %v1132, %v1135
        %v1137 = vrot.slane %v1125, 4
        %v1138 = vsel %vm835, %v1137, %v1119
        %v1139 = vrot.slane %v1119, 4
        %v1140 = vsel %vm835, %v1125, %v1139
        %v1142 = vunpack.c.l.s4 1934713408
        %v1143 = vunpack.c.0.s8 %v1142
        %v1144 = vperm.slane %v1138, %v1143
        %v1146 = vunpack.c.l.s4 1934713408
        %v1147 = vunpack.c.0.s8 %v1146
        %v1148 = vperm.slane %v1140, %v1147
        %v1149 = vrot.slane %v1136, 4
        %v1150 = vsel %vm835, %v1149, %v1130
        %v1151 = vrot.slane %v1130, 4
        %v1152 = vsel %vm835, %v1136, %v1151
        %v1154 = vunpack.c.l.s4 1934713408
        %v1155 = vunpack.c.0.s8 %v1154
        %v1156 = vperm.slane %v1150, %v1155
        %v1158 = vunpack.c.l.s4 1934713408
        %v1159 = vunpack.c.0.s8 %v1158
        %v1160 = vperm.slane %v1152, %v1159
        %v1161 = vrot.slane %v1156, 4
        %v1162 = vsel %vm835, %v1161, %v1144
        %v1163 = vrot.slane %v1144, 4
        %v1164 = vsel %vm835, %v1156, %v1163
        %v1165 = vrot.slane %v1160, 4
        %v1166 = vsel %vm835, %v1165, %v1148
        %v1167 = vrot.slane %v1148, 4
        %v1168 = vsel %vm835, %v1160, %v1167
        %v1169 = vpack.c.bf16 %v1100, %v1100
        %v1170 = vpack.c.bf16 %v1102, %v1102
        %v1171 = vpack.c.bf16 %v1104, %v1104
        %v1172 = vpack.c.bf16 %v1106, %v1106
        %v1173 = vpack.c.bf16 %v1108, %v1108
        %v1174 = vpack.c.bf16 %v1110, %v1110
        %v1175 = vpack.c.bf16 %v1112, %v1112
        %v1176 = vpack.c.bf16 %v1114, %v1114
        %v1177 = vpack.c.bf16 %v1162, %v1162
        %v1178 = vpack.c.bf16 %v1164, %v1164
        %v1179 = vpack.c.bf16 %v1166, %v1166
        %v1180 = vpack.c.bf16 %v1168, %v1168
        %vm1181 = vcmask 64512
        %v1183 = vsel %vm1181, %v1169, 0
        %v1186 = vsel %vm1181, %v1173, 0
        %1188 = vmatpush.bf16.xpose.msra.mxu0 0
        %1189 = vmatpush.bf16.xpose.msra.mxu0 0
        %1190 = vmatpush.bf16.xpose.msra.mxu0 0
        %1191 = vmatpush.bf16.xpose.msra.mxu0 0
        %1192 = vmatpush.bf16.xpose.msra.mxu0 0
        %1193 = vmatpush.bf16.xpose.msra.mxu0 0
        %1194 = vmatpush.bf16.xpose.msra.mxu0 0
        %1195 = vmatpush.bf16.xpose.msra.mxu0 %v1186
        %1196 = vmatmul.bf16.gmra.mxu0 %v1183
        %v1197 = vpop.f32.mrf.mxu0
        %v1198 = vadd.f32 %v761, %v1197
        %v1199 = vpop.f32.mrf.mxu0
        %1200 = vdwg.mxu0
        %v1202 = vsel %vm1181, %v1170, 0
        %v1205 = vsel %vm1181, %v1174, 0
        %1207 = vmatpush.bf16.xpose.msra.mxu0 0
        %1208 = vmatpush.bf16.xpose.msra.mxu0 0
        %1209 = vmatpush.bf16.xpose.msra.mxu0 0
        %1210 = vmatpush.bf16.xpose.msra.mxu0 0
        %1211 = vmatpush.bf16.xpose.msra.mxu0 0
        %1212 = vmatpush.bf16.xpose.msra.mxu0 0
        %1213 = vmatpush.bf16.xpose.msra.mxu0 0
        %1214 = vmatpush.bf16.xpose.msra.mxu0 %v1205
        %1215 = vmatmul.bf16.gmra.mxu0 %v1202
        %v1216 = vpop.f32.mrf.mxu0
        %v1217 = vadd.f32 %v761, %v1216
        %v1218 = vpop.f32.mrf.mxu0
        %1219 = vdwg.mxu0
        %v1221 = vsel %vm1181, %v1171, 0
        %v1224 = vsel %vm1181, %v1175, 0
        %1226 = vmatpush.bf16.xpose.msra.mxu0 0
        %1227 = vmatpush.bf16.xpose.msra.mxu0 0
        %1228 = vmatpush.bf16.xpose.msra.mxu0 0
        %1229 = vmatpush.bf16.xpose.msra.mxu0 0
        %1230 = vmatpush.bf16.xpose.msra.mxu0 0
        %1231 = vmatpush.bf16.xpose.msra.mxu0 0
        %1232 = vmatpush.bf16.xpose.msra.mxu0 0
        %1233 = vmatpush.bf16.xpose.msra.mxu0 %v1224
        %1234 = vmatmul.bf16.gmra.mxu0 %v1221
        %v1235 = vpop.f32.mrf.mxu0
        %v1236 = vadd.f32 %v761, %v1235
        %v1237 = vpop.f32.mrf.mxu0
        %1238 = vdwg.mxu0
        %v1240 = vsel %vm1181, %v1172, 0
        %v1243 = vsel %vm1181, %v1176, 0
        %1245 = vmatpush.bf16.xpose.msra.mxu0 0
        %1246 = vmatpush.bf16.xpose.msra.mxu0 0
        %1247 = vmatpush.bf16.xpose.msra.mxu0 0
        %1248 = vmatpush.bf16.xpose.msra.mxu0 0
        %1249 = vmatpush.bf16.xpose.msra.mxu0 0
        %1250 = vmatpush.bf16.xpose.msra.mxu0 0
        %1251 = vmatpush.bf16.xpose.msra.mxu0 0
        %1252 = vmatpush.bf16.xpose.msra.mxu0 %v1243
        %1253 = vmatmul.bf16.gmra.mxu0 %v1240
        %v1254 = vpop.f32.mrf.mxu0
        %v1255 = vadd.f32 %v761, %v1254
        %v1256 = vpop.f32.mrf.mxu0
        %1257 = vdwg.mxu0
        %v1258 = vsel %vm1181, %v1198, -inf
        %1259 = vmax.xlane.f32.xlu0 %v1258
        %v1260 = vpop.xlane.xlu0 %1259
        %v1261 = vsel %vm1181, %v1217, -inf
        %1262 = vmax.xlane.f32.xlu0 %v1261
        %v1263 = vpop.xlane.xlu0 %1262
        %v1264 = vsel %vm1181, %v1236, -inf
        %1265 = vmax.xlane.f32.xlu0 %v1264
        %v1266 = vpop.xlane.xlu0 %1265
        %v1267 = vsel %vm1181, %v1255, -inf
        %1268 = vmax.xlane.f32.xlu0 %v1267
        %v1269 = vpop.xlane.xlu0 %1268
        %v1270 = vsub.f32 %v1198, %v1260
        %v1271 = vsub.f32 %v1217, %v1263
        %v1272 = vsub.f32 %v1236, %v1266
        %v1273 = vsub.f32 %v1255, %v1269
        %v1274 = vmul.f32 %v1270, 1.442695
        %v1275 = vpow.pop %v1274
        %v1276 = vmul.f32 %v1271, 1.442695
        %v1277 = vpow.pop %v1276
        %v1278 = vmul.f32 %v1272, 1.442695
        %v1279 = vpow.pop %v1278
        %v1280 = vmul.f32 %v1273, 1.442695
        %v1281 = vpow.pop %v1280
        %v1282 = vsel %vm1181, %v1275, 0.0
        %1283 = vadd.xlane.f32.xlu0 %v1282
        %v1284 = vpop.xlane.xlu0 %1283
        %v1285 = vsel %vm1181, %v1277, 0.0
        %1286 = vadd.xlane.f32.xlu0 %v1285
        %v1287 = vpop.xlane.xlu0 %1286
        %v1288 = vsel %vm1181, %v1279, 0.0
        %1289 = vadd.xlane.f32.xlu0 %v1288
        %v1290 = vpop.xlane.xlu0 %1289
        %v1291 = vsel %vm1181, %v1281, 0.0
        %1292 = vadd.xlane.f32.xlu0 %v1291
        %v1293 = vpop.xlane.xlu0 %1292
        %v1294 = vpack.c.bf16 %v1275, %v1275
        %v1295 = vpack.c.bf16 %v1277, %v1277
        %v1296 = vpack.c.bf16 %v1279, %v1279
        %v1297 = vpack.c.bf16 %v1281, %v1281
        %v1299 = vsel %vm1181, %v1294, 0
        %vm1301 = vcmask 1043456
        %v1303 = vsel %vm1301, %v1177, 0
        %1305 = vmatpush.bf16.msra.mxu0 0
        %1306 = vmatpush.bf16.msra.mxu0 0
        %1307 = vmatpush.bf16.msra.mxu0 0
        %1308 = vmatpush.bf16.msra.mxu0 0
        %1309 = vmatpush.bf16.msra.mxu0 0
        %1310 = vmatpush.bf16.msra.mxu0 0
        %1311 = vmatpush.bf16.msra.mxu0 0
        %1312 = vmatpush.bf16.msra.mxu0 %v1303
        %1313 = vmatmul.bf16.gmra.mxu0 %v1299
        %v1314 = vpop.f32.mrf.mxu0
        %v1315 = vadd.f32 0.0, %v1314
        %v1316 = vpop.f32.mrf.mxu0
        %1317 = vdwg.mxu0
        %v1319 = vsel %vm1181, %v1295, 0
        %v1322 = vsel %vm1301, %v1178, 0
        %1324 = vmatpush.bf16.msra.mxu0 0
        %1325 = vmatpush.bf16.msra.mxu0 0
        %1326 = vmatpush.bf16.msra.mxu0 0
        %1327 = vmatpush.bf16.msra.mxu0 0
        %1328 = vmatpush.bf16.msra.mxu0 0
        %1329 = vmatpush.bf16.msra.mxu0 0
        %1330 = vmatpush.bf16.msra.mxu0 0
        %1331 = vmatpush.bf16.msra.mxu0 %v1322
        %1332 = vmatmul.bf16.gmra.mxu0 %v1319
        %v1333 = vpop.f32.mrf.mxu0
        %v1334 = vadd.f32 0.0, %v1333
        %v1335 = vpop.f32.mrf.mxu0
        %1336 = vdwg.mxu0
        %v1338 = vsel %vm1181, %v1296, 0
        %v1341 = vsel %vm1301, %v1179, 0
        %1343 = vmatpush.bf16.msra.mxu0 0
        %1344 = vmatpush.bf16.msra.mxu0 0
        %1345 = vmatpush.bf16.msra.mxu0 0
        %1346 = vmatpush.bf16.msra.mxu0 0
        %1347 = vmatpush.bf16.msra.mxu0 0
        %1348 = vmatpush.bf16.msra.mxu0 0
        %1349 = vmatpush.bf16.msra.mxu0 0
        %1350 = vmatpush.bf16.msra.mxu0 %v1341
        %1351 = vmatmul.bf16.gmra.mxu0 %v1338
        %v1352 = vpop.f32.mrf.mxu0
        %v1353 = vadd.f32 0.0, %v1352
        %v1354 = vpop.f32.mrf.mxu0
        %1355 = vdwg.mxu0
        %v1357 = vsel %vm1181, %v1297, 0
        %v1360 = vsel %vm1301, %v1180, 0
        %1362 = vmatpush.bf16.msra.mxu0 0
        %1363 = vmatpush.bf16.msra.mxu0 0
        %1364 = vmatpush.bf16.msra.mxu0 0
        %1365 = vmatpush.bf16.msra.mxu0 0
        %1366 = vmatpush.bf16.msra.mxu0 0
        %1367 = vmatpush.bf16.msra.mxu0 0
        %1368 = vmatpush.bf16.msra.mxu0 0
        %1369 = vmatpush.bf16.msra.mxu0 %v1360
        %1370 = vmatmul.bf16.gmra.mxu0 %v1357
        %v1371 = vpop.f32.mrf.mxu0
        %v1372 = vadd.f32 0.0, %v1371
        %v1373 = vpop.f32.mrf.mxu0
        %1374 = vdwg.mxu0
        %v1375 = vrcp.pop %v1284
        %v1376 = vmul.f32 %v1284, %v1375
        %v1377 = vsub.f32 1.0, %v1376
        %v1378 = vmul.f32 %v1375, %v1377
        %v1379 = vadd.f32 %v1375, %v1378
        %vm1380 = vweird.f32 %v1284
        %vm1381 = vweird.f32 %v1375
        %vm1382 = vmor %vm1380, %vm1381
        %v1383 = vsel %vm1382, %v1375, %v1379
        %v1384 = vand.u32 2147483647, %v1284
        %vm1385 = vcmp.eq.f32.partialorder %v1384, 8.507059e+37
        %v1386 = vand.u32 %v1284, 2147483648
        %v1387 = vor.u32 1.1754944e-38, %v1386
        %v1388 = vsel %vm1385, %v1387, %v1383
        %v1389 = vrcp.pop %v1287
        %v1390 = vmul.f32 %v1287, %v1389
        %v1391 = vsub.f32 1.0, %v1390
        %v1392 = vmul.f32 %v1389, %v1391
        %v1393 = vadd.f32 %v1389, %v1392
        %vm1394 = vweird.f32 %v1287
        %vm1395 = vweird.f32 %v1389
        %vm1396 = vmor %vm1394, %vm1395
        %v1397 = vsel %vm1396, %v1389, %v1393
        %v1398 = vand.u32 2147483647, %v1287
        %vm1399 = vcmp.eq.f32.partialorder %v1398, 8.507059e+37
        %v1400 = vand.u32 %v1287, 2147483648
        %v1401 = vor.u32 1.1754944e-38, %v1400
        %v1402 = vsel %vm1399, %v1401, %v1397
        %v1403 = vrcp.pop %v1290
        %v1404 = vmul.f32 %v1290, %v1403
        %v1405 = vsub.f32 1.0, %v1404
        %v1406 = vmul.f32 %v1403, %v1405
        %v1407 = vadd.f32 %v1403, %v1406
        %vm1408 = vweird.f32 %v1290
        %vm1409 = vweird.f32 %v1403
        %vm1410 = vmor %vm1408, %vm1409
        %v1411 = vsel %vm1410, %v1403, %v1407
        %v1412 = vand.u32 2147483647, %v1290
        %vm1413 = vcmp.eq.f32.partialorder %v1412, 8.507059e+37
        %v1414 = vand.u32 %v1290, 2147483648
        %v1415 = vor.u32 1.1754944e-38, %v1414
        %v1416 = vsel %vm1413, %v1415, %v1411
        %v1417 = vrcp.pop %v1293
        %v1418 = vmul.f32 %v1293, %v1417
        %v1419 = vsub.f32 1.0, %v1418
        %v1420 = vmul.f32 %v1417, %v1419
        %v1421 = vadd.f32 %v1417, %v1420
        %vm1422 = vweird.f32 %v1293
        %vm1423 = vweird.f32 %v1417
        %vm1424 = vmor %vm1422, %vm1423
        %v1425 = vsel %vm1424, %v1417, %v1421
        %v1426 = vand.u32 2147483647, %v1293
        %vm1427 = vcmp.eq.f32.partialorder %v1426, 8.507059e+37
        %v1428 = vand.u32 %v1293, 2147483648
        %v1429 = vor.u32 1.1754944e-38, %v1428
        %v1430 = vsel %vm1427, %v1429, %v1425
        %v1431 = vmul.f32 %v1315, %v1388
        %v1432 = vmul.f32 %v1334, %v1402
        %v1433 = vmul.f32 %v1353, %v1416
        %v1434 = vmul.f32 %v1372, %v1430
        %v1435 = vrot.slane %v1433, 4
        %v1436 = vsel %vm835, %v1435, %v1431
        %v1437 = vrot.slane %v1431, 4
        %v1438 = vsel %vm835, %v1433, %v1437
        %v1440 = vunpack.c.l.s4 1983009808
        %v1441 = vunpack.c.0.s8 %v1440
        %v1442 = vperm.slane %v1436, %v1441
        %v1444 = vunpack.c.l.s4 1983009808
        %v1445 = vunpack.c.0.s8 %v1444
        %v1446 = vperm.slane %v1438, %v1445
        %v1447 = vrot.slane %v1434, 4
        %v1448 = vsel %vm835, %v1447, %v1432
        %v1449 = vrot.slane %v1432, 4
        %v1450 = vsel %vm835, %v1434, %v1449
        %v1452 = vunpack.c.l.s4 1983009808
        %v1453 = vunpack.c.0.s8 %v1452
        %v1454 = vperm.slane %v1448, %v1453
        %v1456 = vunpack.c.l.s4 1983009808
        %v1457 = vunpack.c.0.s8 %v1456
        %v1458 = vperm.slane %v1450, %v1457
        %v1459 = vrot.slane %v1454, 4
        %v1460 = vsel %vm835, %v1459, %v1442
        %v1461 = vrot.slane %v1442, 4
        %v1462 = vsel %vm835, %v1454, %v1461
        %v1464 = vunpack.c.l.s4 1934713408
        %v1465 = vunpack.c.0.s8 %v1464
        %v1466 = vperm.slane %v1460, %v1465
        %v1468 = vunpack.c.l.s4 1934713408
        %v1469 = vunpack.c.0.s8 %v1468
        %v1470 = vperm.slane %v1462, %v1469
        %v1471 = vrot.slane %v1458, 4
        %v1472 = vsel %vm835, %v1471, %v1446
        %v1473 = vrot.slane %v1446, 4
        %v1474 = vsel %vm835, %v1458, %v1473
        %v1476 = vunpack.c.l.s4 1934713408
        %v1477 = vunpack.c.0.s8 %v1476
        %v1478 = vperm.slane %v1472, %v1477
        %v1480 = vunpack.c.l.s4 1934713408
        %v1481 = vunpack.c.0.s8 %v1480
        %v1482 = vperm.slane %v1474, %v1481
        %v1483 = vrot.slane %v1466, 4
        %v1484 = vsel %vm835, 0.0, %v1483
        %v1485 = vrot.slane %v1470, 4
        %v1486 = vsel %vm835, 0.0, %v1485
        %v1487 = vrot.slane %v1478, 4
        %v1488 = vsel %vm835, 0.0, %v1487
        %v1489 = vrot.slane %v1482, 4
        %v1490 = vsel %vm835, 0.0, %v1489
        %v1491 = vsel %vm835, %v1485, %v1466
        %v1493 = vunpack.c.l.s4 1983009808
        %v1494 = vunpack.c.0.s8 %v1493
        %v1495 = vperm.slane %v1491, %v1494
        %v1496 = vrot.slane %v1486, 4
        %v1497 = vsel %vm835, %v1496, %v1484
        %v1499 = vunpack.c.l.s4 1983009808
        %v1500 = vunpack.c.0.s8 %v1499
        %v1501 = vperm.slane %v1497, %v1500
        %v1502 = vsel %vm835, %v1489, %v1478
        %v1504 = vunpack.c.l.s4 1983009808
        %v1505 = vunpack.c.0.s8 %v1504
        %v1506 = vperm.slane %v1502, %v1505
        %v1507 = vrot.slane %v1490, 4
        %v1508 = vsel %vm835, %v1507, %v1488
        %v1510 = vunpack.c.l.s4 1983009808
        %v1511 = vunpack.c.0.s8 %v1510
        %v1512 = vperm.slane %v1508, %v1511
        %v1513 = vrot.slane %v1501, 4
        %v1514 = vsel %vm835, %v1513, %v1495
        %v1515 = vrot.slane %v1495, 4
        %v1516 = vsel %vm835, %v1501, %v1515
        %v1518 = vunpack.c.l.s4 1934713408
        %v1519 = vunpack.c.0.s8 %v1518
        %v1520 = vperm.slane %v1514, %v1519
        %v1522 = vunpack.c.l.s4 1934713408
        %v1523 = vunpack.c.0.s8 %v1522
        %v1524 = vperm.slane %v1516, %v1523
        %v1525 = vrot.slane %v1512, 4
        %v1526 = vsel %vm835, %v1525, %v1506
        %v1527 = vrot.slane %v1506, 4
        %v1528 = vsel %vm835, %v1512, %v1527
        %v1530 = vunpack.c.l.s4 1934713408
        %v1531 = vunpack.c.0.s8 %v1530
        %v1532 = vperm.slane %v1526, %v1531
        %v1534 = vunpack.c.l.s4 1934713408
        %v1535 = vunpack.c.0.s8 %v1534
        %v1536 = vperm.slane %v1528, %v1535
        %v1537 = vrot.slane %v1532, 4
        %v1538 = vsel %vm835, %v1537, %v1520
        %v1539 = vrot.slane %v1520, 4
        %v1540 = vsel %vm835, %v1532, %v1539
        %v1541 = vrot.slane %v1536, 4
        %v1542 = vsel %vm835, %v1541, %v1524
        %v1543 = vrot.slane %v1524, 4
        %v1544 = vsel %vm835, %v1536, %v1543
        %1546 = vrot.lane.b32.xlu0 %v1540, 8
        %v1547 = vpop.permute.xlu0 %1546
        %1550 = vrot.lane.b32.xlu0 %v1542, 16
        %v1551 = vpop.permute.xlu0 %1550
        %1554 = vrot.lane.b32.xlu0 %v1544, 24
        %v1555 = vpop.permute.xlu0 %1554
        %v1557 = vsel %vm1181, %v1538, %v1547
        %vm1558 = vcmask 130048
        %v1559 = vsel %vm1558, %v1557, %v1551
        %vm1560 = vcmask 195584
        %v1561 = vsel %vm1560, %v1559, %v1555
        %v1562 = vpack.c.bf16 %v1561, %v1561
        %v1563 = vld [vmem:[#allocation7] sm:$0xf]
        %v1564 = vld [vmem:[#allocation7 + $0x4] sm:$0xf]
        %v1565 = vld [vmem:[#allocation7 + $0x8] sm:$0xf]
        %v1566 = vld [vmem:[#allocation7 + $0xc] sm:$0xf]
        %v1567 = vld [vmem:[#allocation8] sm:$0x1]
        %v1569 = vperm.slane %v1567, 0
        %v1575 = vunpack.c.l.b16 %v1563
        %v1576 = vunpack.c.l.b16 %v1564
        %v1577 = vunpack.c.l.b16 %v1565
        %v1578 = vunpack.c.l.b16 %v1566
        %v1579 = vpack.c.b16 %v1576, %v1575
        %v1580 = vpack.c.b16 %v1578, %v1577
        %v1584 = vsel %vm783, %v1562, 0
        %1586 = vmatpush.bf16.msra.mxu0 0
        %1587 = vmatpush.bf16.msra.mxu0 0
        %1588 = vmatpush.bf16.msra.mxu0 0
        %1589 = vmatpush.bf16.msra.mxu0 0
        %1590 = vmatpush.bf16.msra.mxu0 0
        %1591 = vmatpush.bf16.msra.mxu0 0
        %1592 = vmatpush.bf16.msra.mxu0 %v1580
        %1593 = vmatpush.bf16.msra.mxu0 %v1579
        %1594 = vmatmul.bf16.gmra.mxu0 %v1584
        %v1595 = vpop.f32.mrf.mxu0
        %v1596 = vadd.f32 %v1569, %v1595
        %v1597 = vpop.f32.mrf.mxu0
        %1598 = vdwg.mxu0
        %v1599 = vadd.f32 %v757, %v1596
        %v1600 = vld [vmem:[%s17] sm:$0x1]
        %v1601 = vld [vmem:[%s18] sm:$0x1]
        %v1602 = vsel %vm783, %v1599, 0.0
        %1603 = vadd.xlane.f32.xlu0 %v1602
        %v1604 = vpop.xlane.xlu0 %1603
        %v1605 = vrcp.pop 32.0
        %v1606 = vmul.f32 32.0, %v1605
        %v1607 = vsub.f32 1.0, %v1606
        %v1608 = vmul.f32 %v1605, %v1607
        %v1609 = vadd.f32 %v1605, %v1608
        %vm1610 = vweird.f32 %v1605
        %v1611 = vsel %vm1610, %v1605, %v1609
        %v1612 = vmul.f32 %v1604, %v1611
        %v1613 = vsub.f32 %v1599, %v1612
        %v1614 = vmul.f32 %v1613, %v1613
        %v1615 = vsel %vm783, %v1614, 0.0
        %1616 = vadd.xlane.f32.xlu0 %v1615
        %v1617 = vpop.xlane.xlu0 %1616
        %v1618 = vmul.f32 %v1617, %v1611
        %v1619 = vadd.f32 %v1618, 1e-05
        %v1620 = vrsqrt.pop %v1619
        %v1621 = vmul.f32 %v1620, %v1619
        %v1622 = vmul.f32 %v1621, %v1620
        %v1623 = vmul.f32 0.5, %v1622
        %v1624 = vsub.f32 1.5, %v1623
        %v1625 = vmul.f32 %v1620, %v1624
        %vm1626 = vweird.f32 %v1619
        %vm1627 = vweird.f32 %v1620
        %vm1628 = vmor %vm1626, %vm1627
        %v1629 = vsel %vm1628, %v1620, %v1625
        %v1630 = vmul.f32 %v1613, %v1629
        %v1631 = vperm.slane %v1600, 0
        %v1632 = vmul.f32 %v1630, %v1631
        %v1633 = vperm.slane %v1601, 0
        %v1634 = vadd.f32 %v1632, %v1633
        %v1635 = vpack.c.bf16 %v1634, %v1634
        %v1636 = vld [vmem:[#allocation10] sm:$0xf]
        %v1637 = vld [vmem:[#allocation10 + $0x4] sm:$0xf]
        %v1638 = vld [vmem:[#allocation10 + $0x8] sm:$0xf]
        %v1639 = vld [vmem:[#allocation10 + $0xc] sm:$0xf]
        %v1640 = vld [vmem:[#allocation11] sm:$0x1]
        %v1642 = vperm.slane %v1640, 0
        %v1648 = vunpack.c.l.b16 %v1636
        %v1649 = vunpack.c.l.b16 %v1637
        %v1650 = vunpack.c.l.b16 %v1638
        %v1651 = vunpack.c.l.b16 %v1639
        %v1652 = vpack.c.b16 %v1649, %v1648
        %v1653 = vpack.c.b16 %v1651, %v1650
        %v1657 = vsel %vm783, %v1635, 0
        %1659 = vmatpush.bf16.msra.mxu0 0
        %1660 = vmatpush.bf16.msra.mxu0 0
        %1661 = vmatpush.bf16.msra.mxu0 0
        %1662 = vmatpush.bf16.msra.mxu0 0
        %1663 = vmatpush.bf16.msra.mxu0 0
        %1664 = vmatpush.bf16.msra.mxu0 0
        %1665 = vmatpush.bf16.msra.mxu0 %v1653
        %1666 = vmatpush.bf16.msra.mxu0 %v1652
        %1667 = vmatmul.bf16.gmra.mxu0 %v1657
        %v1668 = vpop.f32.mrf.mxu0
        %v1669 = vadd.f32 %v1642, %v1668
        %v1670 = vpop.f32.mrf.mxu0
        %1671 = vdwg.mxu0
        %v1672 = vpack.c.bf16 %v758, %v758
        %v1673 = vld [vmem:[#allocation13] sm:$0xf]
        %v1674 = vld [vmem:[#allocation13 + $0x4] sm:$0xf]
        %v1675 = vld [vmem:[#allocation13 + $0x8] sm:$0xf]
        %v1676 = vld [vmem:[#allocation13 + $0xc] sm:$0xf]
        %v1677 = vld [vmem:[%s10] sm:$0x1]
        %v1679 = vperm.slane %v1677, 0
        %v1685 = vunpack.c.l.b16 %v1673
        %v1686 = vunpack.c.l.b16 %v1674
        %v1687 = vunpack.c.l.b16 %v1675
        %v1688 = vunpack.c.l.b16 %v1676
        %v1689 = vpack.c.b16 %v1686, %v1685
        %v1690 = vpack.c.b16 %v1688, %v1687
        %v1694 = vsel %vm783, %v1672, 0
        %1696 = vmatpush.bf16.msra.mxu0 0
        %1697 = vmatpush.bf16.msra.mxu0 0
        %1698 = vmatpush.bf16.msra.mxu0 0
        %1699 = vmatpush.bf16.msra.mxu0 0
        %1700 = vmatpush.bf16.msra.mxu0 0
        %1701 = vmatpush.bf16.msra.mxu0 0
        %1702 = vmatpush.bf16.msra.mxu0 %v1690
        %1703 = vmatpush.bf16.msra.mxu0 %v1689
        %1704 = vmatmul.bf16.gmra.mxu0 %v1694
        %v1705 = vpop.f32.mrf.mxu0
        %v1706 = vadd.f32 %v1679, %v1705
        %v1707 = vpop.f32.mrf.mxu0
        %1708 = vdwg.mxu0
        %1710 = vrot.lane.b32.xlu0 %v1669, 120
        %v1711 = vpop.permute.xlu0 %1710
        %1713 = vrot.lane.b32.xlu0 %v1669, 112
        %v1714 = vpop.permute.xlu0 %1713
        %1716 = vrot.lane.b32.xlu0 %v1669, 104
        %v1717 = vpop.permute.xlu0 %1716
        %v1719 = vrot.slane %v1714, 4
        %v1720 = vsel %vm835, %v1719, %v1669
        %v1721 = vrot.slane %v1669, 4
        %v1722 = vsel %vm835, %v1714, %v1721
        %v1724 = vunpack.c.l.s4 1983009808
        %v1725 = vunpack.c.0.s8 %v1724
        %v1726 = vperm.slane %v1720, %v1725
        %v1728 = vunpack.c.l.s4 1983009808
        %v1729 = vunpack.c.0.s8 %v1728
        %v1730 = vperm.slane %v1722, %v1729
        %v1731 = vrot.slane %v1717, 4
        %v1732 = vsel %vm835, %v1731, %v1711
        %v1733 = vrot.slane %v1711, 4
        %v1734 = vsel %vm835, %v1717, %v1733
        %v1736 = vunpack.c.l.s4 1983009808
        %v1737 = vunpack.c.0.s8 %v1736
        %v1738 = vperm.slane %v1732, %v1737
        %v1740 = vunpack.c.l.s4 1983009808
        %v1741 = vunpack.c.0.s8 %v1740
        %v1742 = vperm.slane %v1734, %v1741
        %v1743 = vrot.slane %v1738, 4
        %v1744 = vsel %vm835, %v1743, %v1726
        %v1745 = vrot.slane %v1726, 4
        %v1746 = vsel %vm835, %v1738, %v1745
        %v1748 = vunpack.c.l.s4 1934713408
        %v1749 = vunpack.c.0.s8 %v1748
        %v1750 = vperm.slane %v1744, %v1749
        %v1752 = vunpack.c.l.s4 1934713408
        %v1753 = vunpack.c.0.s8 %v1752
        %v1754 = vperm.slane %v1746, %v1753
        %v1755 = vrot.slane %v1742, 4
        %v1756 = vsel %vm835, %v1755, %v1730
        %v1757 = vrot.slane %v1730, 4
        %v1758 = vsel %vm835, %v1742, %v1757
        %v1760 = vunpack.c.l.s4 1934713408
        %v1761 = vunpack.c.0.s8 %v1760
        %v1762 = vperm.slane %v1756, %v1761
        %v1764 = vunpack.c.l.s4 1934713408
        %v1765 = vunpack.c.0.s8 %v1764
        %v1766 = vperm.slane %v1758, %v1765
        %v1767 = vrot.slane %v1750, 4
        %v1768 = vsel %vm835, 0.0, %v1767
        %v1769 = vrot.slane %v1754, 4
        %v1770 = vsel %vm835, 0.0, %v1769
        %v1771 = vrot.slane %v1762, 4
        %v1772 = vsel %vm835, 0.0, %v1771
        %v1773 = vrot.slane %v1766, 4
        %v1774 = vsel %vm835, 0.0, %v1773
        %v1775 = vsel %vm835, %v1769, %v1750
        %v1777 = vunpack.c.l.s4 1983009808
        %v1778 = vunpack.c.0.s8 %v1777
        %v1779 = vperm.slane %v1775, %v1778
        %v1780 = vrot.slane %v1770, 4
        %v1781 = vsel %vm835, %v1780, %v1768
        %v1783 = vunpack.c.l.s4 1983009808
        %v1784 = vunpack.c.0.s8 %v1783
        %v1785 = vperm.slane %v1781, %v1784
        %v1786 = vsel %vm835, %v1773, %v1762
        %v1788 = vunpack.c.l.s4 1983009808
        %v1789 = vunpack.c.0.s8 %v1788
        %v1790 = vperm.slane %v1786, %v1789
        %v1791 = vrot.slane %v1774, 4
        %v1792 = vsel %vm835, %v1791, %v1772
        %v1794 = vunpack.c.l.s4 1983009808
        %v1795 = vunpack.c.0.s8 %v1794
        %v1796 = vperm.slane %v1792, %v1795
        %v1797 = vrot.slane %v1785, 4
        %v1798 = vsel %vm835, %v1797, %v1779
        %v1799 = vrot.slane %v1779, 4
        %v1800 = vsel %vm835, %v1785, %v1799
        %v1802 = vunpack.c.l.s4 1934713408
        %v1803 = vunpack.c.0.s8 %v1802
        %v1804 = vperm.slane %v1798, %v1803
        %v1806 = vunpack.c.l.s4 1934713408
        %v1807 = vunpack.c.0.s8 %v1806
        %v1808 = vperm.slane %v1800, %v1807
        %v1809 = vrot.slane %v1796, 4
        %v1810 = vsel %vm835, %v1809, %v1790
        %v1811 = vrot.slane %v1790, 4
        %v1812 = vsel %vm835, %v1796, %v1811
        %v1814 = vunpack.c.l.s4 1934713408
        %v1815 = vunpack.c.0.s8 %v1814
        %v1816 = vperm.slane %v1810, %v1815
        %v1818 = vunpack.c.l.s4 1934713408
        %v1819 = vunpack.c.0.s8 %v1818
        %v1820 = vperm.slane %v1812, %v1819
        %v1821 = vrot.slane %v1816, 4
        %v1822 = vsel %vm835, %v1821, %v1804
        %v1823 = vrot.slane %v1804, 4
        %v1824 = vsel %vm835, %v1816, %v1823
        %v1825 = vrot.slane %v1820, 4
        %v1826 = vsel %vm835, %v1825, %v1808
        %v1827 = vrot.slane %v1808, 4
        %v1828 = vsel %vm835, %v1820, %v1827
        %v1829 = vpack.c.bf16 %v1822, %v1822
        %v1830 = vpack.c.bf16 %v1824, %v1824
        %v1831 = vpack.c.bf16 %v1826, %v1826
        %v1832 = vpack.c.bf16 %v1828, %v1828
        %1834 = vrot.lane.b32.xlu0 %v1706, 120
        %v1835 = vpop.permute.xlu0 %1834
        %1837 = vrot.lane.b32.xlu0 %v1706, 112
        %v1838 = vpop.permute.xlu0 %1837
        %1840 = vrot.lane.b32.xlu0 %v1706, 104
        %v1841 = vpop.permute.xlu0 %1840
        %1843 = vrot.lane.b32.xlu0 %v1706, 96
        %v1844 = vpop.permute.xlu0 %1843
        %1846 = vrot.lane.b32.xlu0 %v1706, 88
        %v1847 = vpop.permute.xlu0 %1846
        %1849 = vrot.lane.b32.xlu0 %v1706, 80
        %v1850 = vpop.permute.xlu0 %1849
        %1852 = vrot.lane.b32.xlu0 %v1706, 72
        %v1853 = vpop.permute.xlu0 %1852
        %v1855 = vrot.slane %v1838, 4
        %v1856 = vsel %vm835, %v1855, %v1706
        %v1857 = vrot.slane %v1706, 4
        %v1858 = vsel %vm835, %v1838, %v1857
        %v1860 = vunpack.c.l.s4 1983009808
        %v1861 = vunpack.c.0.s8 %v1860
        %v1862 = vperm.slane %v1856, %v1861
        %v1864 = vunpack.c.l.s4 1983009808
        %v1865 = vunpack.c.0.s8 %v1864
        %v1866 = vperm.slane %v1858, %v1865
        %v1867 = vrot.slane %v1841, 4
        %v1868 = vsel %vm835, %v1867, %v1835
        %v1869 = vrot.slane %v1835, 4
        %v1870 = vsel %vm835, %v1841, %v1869
        %v1872 = vunpack.c.l.s4 1983009808
        %v1873 = vunpack.c.0.s8 %v1872
        %v1874 = vperm.slane %v1868, %v1873
        %v1876 = vunpack.c.l.s4 1983009808
        %v1877 = vunpack.c.0.s8 %v1876
        %v1878 = vperm.slane %v1870, %v1877
        %v1879 = vrot.slane %v1850, 4
        %v1880 = vsel %vm835, %v1879, %v1844
        %v1881 = vrot.slane %v1844, 4
        %v1882 = vsel %vm835, %v1850, %v1881
        %v1884 = vunpack.c.l.s4 1983009808
        %v1885 = vunpack.c.0.s8 %v1884
        %v1886 = vperm.slane %v1880, %v1885
        %v1888 = vunpack.c.l.s4 1983009808
        %v1889 = vunpack.c.0.s8 %v1888
        %v1890 = vperm.slane %v1882, %v1889
        %v1891 = vrot.slane %v1853, 4
        %v1892 = vsel %vm835, %v1891, %v1847
        %v1893 = vrot.slane %v1847, 4
        %v1894 = vsel %vm835, %v1853, %v1893
        %v1896 = vunpack.c.l.s4 1983009808
        %v1897 = vunpack.c.0.s8 %v1896
        %v1898 = vperm.slane %v1892, %v1897
        %v1900 = vunpack.c.l.s4 1983009808
        %v1901 = vunpack.c.0.s8 %v1900
        %v1902 = vperm.slane %v1894, %v1901
        %v1903 = vrot.slane %v1874, 4
        %v1904 = vsel %vm835, %v1903, %v1862
        %v1905 = vrot.slane %v1862, 4
        %v1906 = vsel %vm835, %v1874, %v1905
        %v1908 = vunpack.c.l.s4 1934713408
        %v1909 = vunpack.c.0.s8 %v1908
        %v1910 = vperm.slane %v1904, %v1909
        %v1912 = vunpack.c.l.s4 1934713408
        %v1913 = vunpack.c.0.s8 %v1912
        %v1914 = vperm.slane %v1906, %v1913
        %v1915 = vrot.slane %v1878, 4
        %v1916 = vsel %vm835, %v1915, %v1866
        %v1917 = vrot.slane %v1866, 4
        %v1918 = vsel %vm835, %v1878, %v1917
        %v1920 = vunpack.c.l.s4 1934713408
        %v1921 = vunpack.c.0.s8 %v1920
        %v1922 = vperm.slane %v1916, %v1921
        %v1924 = vunpack.c.l.s4 1934713408
        %v1925 = vunpack.c.0.s8 %v1924
        %v1926 = vperm.slane %v1918, %v1925
        %v1927 = vrot.slane %v1898, 4
        %v1928 = vsel %vm835, %v1927, %v1886
        %v1929 = vrot.slane %v1886, 4
        %v1930 = vsel %vm835, %v1898, %v1929
        %v1932 = vunpack.c.l.s4 1934713408
        %v1933 = vunpack.c.0.s8 %v1932
        %v1934 = vperm.slane %v1928, %v1933
        %v1936 = vunpack.c.l.s4 1934713408
        %v1937 = vunpack.c.0.s8 %v1936
        %v1938 = vperm.slane %v1930, %v1937
        %v1939 = vrot.slane %v1902, 4
        %v1940 = vsel %vm835, %v1939, %v1890
        %v1941 = vrot.slane %v1890, 4
        %v1942 = vsel %vm835, %v1902, %v1941
        %v1944 = vunpack.c.l.s4 1934713408
        %v1945 = vunpack.c.0.s8 %v1944
        %v1946 = vperm.slane %v1940, %v1945
        %v1948 = vunpack.c.l.s4 1934713408
        %v1949 = vunpack.c.0.s8 %v1948
        %v1950 = vperm.slane %v1942, %v1949
        %v1951 = vrot.slane %v1934, 4
        %v1952 = vsel %vm835, %v1951, %v1910
        %v1953 = vrot.slane %v1910, 4
        %v1954 = vsel %vm835, %v1934, %v1953
        %v1955 = vrot.slane %v1938, 4
        %v1956 = vsel %vm835, %v1955, %v1914
        %v1957 = vrot.slane %v1914, 4
        %v1958 = vsel %vm835, %v1938, %v1957
        %v1959 = vrot.slane %v1946, 4
        %v1960 = vsel %vm835, %v1959, %v1922
        %v1961 = vrot.slane %v1922, 4
        %v1962 = vsel %vm835, %v1946, %v1961
        %v1963 = vrot.slane %v1950, 4
        %v1964 = vsel %vm835, %v1963, %v1926
        %v1965 = vrot.slane %v1926, 4
        %v1966 = vsel %vm835, %v1950, %v1965
        %v1967 = vrot.slane %v1956, 4
        %v1968 = vsel %vm835, %v1967, %v1952
        %v1969 = vrot.slane %v1952, 4
        %v1970 = vsel %vm835, %v1956, %v1969
        %v1972 = vunpack.c.l.s4 1983009808
        %v1973 = vunpack.c.0.s8 %v1972
        %v1974 = vperm.slane %v1968, %v1973
        %v1976 = vunpack.c.l.s4 1983009808
        %v1977 = vunpack.c.0.s8 %v1976
        %v1978 = vperm.slane %v1970, %v1977
        %v1979 = vrot.slane %v1958, 4
        %v1980 = vsel %vm835, %v1979, %v1954
        %v1981 = vrot.slane %v1954, 4
        %v1982 = vsel %vm835, %v1958, %v1981
        %v1984 = vunpack.c.l.s4 1983009808
        %v1985 = vunpack.c.0.s8 %v1984
        %v1986 = vperm.slane %v1980, %v1985
        %v1988 = vunpack.c.l.s4 1983009808
        %v1989 = vunpack.c.0.s8 %v1988
        %v1990 = vperm.slane %v1982, %v1989
        %v1991 = vrot.slane %v1964, 4
        %v1992 = vsel %vm835, %v1991, %v1960
        %v1993 = vrot.slane %v1960, 4
        %v1994 = vsel %vm835, %v1964, %v1993
        %v1996 = vunpack.c.l.s4 1983009808
        %v1997 = vunpack.c.0.s8 %v1996
        %v1998 = vperm.slane %v1992, %v1997
        %v2000 = vunpack.c.l.s4 1983009808
        %v2001 = vunpack.c.0.s8 %v2000
        %v2002 = vperm.slane %v1994, %v2001
        %v2003 = vrot.slane %v1966, 4
        %v2004 = vsel %vm835, %v2003, %v1962
        %v2005 = vrot.slane %v1962, 4
        %v2006 = vsel %vm835, %v1966, %v2005
        %v2008 = vunpack.c.l.s4 1983009808
        %v2009 = vunpack.c.0.s8 %v2008
        %v2010 = vperm.slane %v2004, %v2009
        %v2012 = vunpack.c.l.s4 1983009808
        %v2013 = vunpack.c.0.s8 %v2012
        %v2014 = vperm.slane %v2006, %v2013
        %v2015 = vrot.slane %v1986, 4
        %v2016 = vsel %vm835, %v2015, %v1974
        %v2017 = vrot.slane %v1974, 4
        %v2018 = vsel %vm835, %v1986, %v2017
        %v2020 = vunpack.c.l.s4 1934713408
        %v2021 = vunpack.c.0.s8 %v2020
        %v2022 = vperm.slane %v2016, %v2021
        %v2024 = vunpack.c.l.s4 1934713408
        %v2025 = vunpack.c.0.s8 %v2024
        %v2026 = vperm.slane %v2018, %v2025
        %v2027 = vrot.slane %v1990, 4
        %v2028 = vsel %vm835, %v2027, %v1978
        %v2029 = vrot.slane %v1978, 4
        %v2030 = vsel %vm835, %v1990, %v2029
        %v2032 = vunpack.c.l.s4 1934713408
        %v2033 = vunpack.c.0.s8 %v2032
        %v2034 = vperm.slane %v2028, %v2033
        %v2036 = vunpack.c.l.s4 1934713408
        %v2037 = vunpack.c.0.s8 %v2036
        %v2038 = vperm.slane %v2030, %v2037
        %v2039 = vrot.slane %v2010, 4
        %v2040 = vsel %vm835, %v2039, %v1998
        %v2041 = vrot.slane %v1998, 4
        %v2042 = vsel %vm835, %v2010, %v2041
        %v2044 = vunpack.c.l.s4 1934713408
        %v2045 = vunpack.c.0.s8 %v2044
        %v2046 = vperm.slane %v2040, %v2045
        %v2048 = vunpack.c.l.s4 1934713408
        %v2049 = vunpack.c.0.s8 %v2048
        %v2050 = vperm.slane %v2042, %v2049
        %v2051 = vrot.slane %v2014, 4
        %v2052 = vsel %vm835, %v2051, %v2002
        %v2053 = vrot.slane %v2002, 4
        %v2054 = vsel %vm835, %v2014, %v2053
        %v2056 = vunpack.c.l.s4 1934713408
        %v2057 = vunpack.c.0.s8 %v2056
        %v2058 = vperm.slane %v2052, %v2057
        %v2060 = vunpack.c.l.s4 1934713408
        %v2061 = vunpack.c.0.s8 %v2060
        %v2062 = vperm.slane %v2054, %v2061
        %v2063 = vrot.slane %v2046, 4
        %v2064 = vsel %vm835, %v2063, %v2022
        %v2065 = vrot.slane %v2022, 4
        %v2066 = vsel %vm835, %v2046, %v2065
        %v2067 = vrot.slane %v2050, 4
        %v2068 = vsel %vm835, %v2067, %v2026
        %v2069 = vrot.slane %v2026, 4
        %v2070 = vsel %vm835, %v2050, %v2069
        %v2071 = vrot.slane %v2058, 4
        %v2072 = vsel %vm835, %v2071, %v2034
        %v2073 = vrot.slane %v2034, 4
        %v2074 = vsel %vm835, %v2058, %v2073
        %v2075 = vrot.slane %v2062, 4
        %v2076 = vsel %vm835, %v2075, %v2038
        %v2077 = vrot.slane %v2038, 4
        %v2078 = vsel %vm835, %v2062, %v2077
        %v2079 = vpack.c.bf16 %v2064, %v2064
        %v2080 = vpack.c.bf16 %v2066, %v2066
        %v2081 = vpack.c.bf16 %v2068, %v2068
        %v2082 = vpack.c.bf16 %v2070, %v2070
        %v2083 = vpack.c.bf16 %v2072, %v2072
        %v2084 = vpack.c.bf16 %v2074, %v2074
        %v2085 = vpack.c.bf16 %v2076, %v2076
        %v2086 = vpack.c.bf16 %v2078, %v2078
        %v2088 = vsel %vm1181, %v1829, 0
        %v2091 = vsel %vm1181, %v2079, 0
        %2093 = vmatpush.bf16.xpose.msra.mxu0 0
        %2094 = vmatpush.bf16.xpose.msra.mxu0 0
        %2095 = vmatpush.bf16.xpose.msra.mxu0 0
        %2096 = vmatpush.bf16.xpose.msra.mxu0 0
        %2097 = vmatpush.bf16.xpose.msra.mxu0 0
        %2098 = vmatpush.bf16.xpose.msra.mxu0 0
        %2099 = vmatpush.bf16.xpose.msra.mxu0 0
        %2100 = vmatpush.bf16.xpose.msra.mxu0 %v2091
        %2101 = vmatmul.bf16.gmra.mxu0 %v2088
        %v2102 = vpop.f32.mrf.mxu0
        %v2103 = vadd.f32 0.0, %v2102
        %v2104 = vpop.f32.mrf.mxu0
        %2105 = vdwg.mxu0
        %v2107 = vsel %vm1181, %v1830, 0
        %v2110 = vsel %vm1181, %v2080, 0
        %2112 = vmatpush.bf16.xpose.msra.mxu0 0
        %2113 = vmatpush.bf16.xpose.msra.mxu0 0
        %2114 = vmatpush.bf16.xpose.msra.mxu0 0
        %2115 = vmatpush.bf16.xpose.msra.mxu0 0
        %2116 = vmatpush.bf16.xpose.msra.mxu0 0
        %2117 = vmatpush.bf16.xpose.msra.mxu0 0
        %2118 = vmatpush.bf16.xpose.msra.mxu0 0
        %2119 = vmatpush.bf16.xpose.msra.mxu0 %v2110
        %2120 = vmatmul.bf16.gmra.mxu0 %v2107
        %v2121 = vpop.f32.mrf.mxu0
        %v2122 = vadd.f32 0.0, %v2121
        %v2123 = vpop.f32.mrf.mxu0
        %2124 = vdwg.mxu0
        %v2126 = vsel %vm1181, %v1831, 0
        %v2129 = vsel %vm1181, %v2081, 0
        %2131 = vmatpush.bf16.xpose.msra.mxu0 0
        %2132 = vmatpush.bf16.xpose.msra.mxu0 0
        %2133 = vmatpush.bf16.xpose.msra.mxu0 0
        %2134 = vmatpush.bf16.xpose.msra.mxu0 0
        %2135 = vmatpush.bf16.xpose.msra.mxu0 0
        %2136 = vmatpush.bf16.xpose.msra.mxu0 0
        %2137 = vmatpush.bf16.xpose.msra.mxu0 0
        %2138 = vmatpush.bf16.xpose.msra.mxu0 %v2129
        %2139 = vmatmul.bf16.gmra.mxu0 %v2126
        %v2140 = vpop.f32.mrf.mxu0
        %v2141 = vadd.f32 0.0, %v2140
        %v2142 = vpop.f32.mrf.mxu0
        %2143 = vdwg.mxu0
        %v2145 = vsel %vm1181, %v1832, 0
        %v2148 = vsel %vm1181, %v2082, 0
        %2150 = vmatpush.bf16.xpose.msra.mxu0 0
        %2151 = vmatpush.bf16.xpose.msra.mxu0 0
        %2152 = vmatpush.bf16.xpose.msra.mxu0 0
        %2153 = vmatpush.bf16.xpose.msra.mxu0 0
        %2154 = vmatpush.bf16.xpose.msra.mxu0 0
        %2155 = vmatpush.bf16.xpose.msra.mxu0 0
        %2156 = vmatpush.bf16.xpose.msra.mxu0 0
        %2157 = vmatpush.bf16.xpose.msra.mxu0 %v2148
        %2158 = vmatmul.bf16.gmra.mxu0 %v2145
        %v2159 = vpop.f32.mrf.mxu0
        %v2160 = vadd.f32 0.0, %v2159
        %v2161 = vpop.f32.mrf.mxu0
        %2162 = vdwg.mxu0
        %v2163 = vsel %vm1181, %v2103, -inf
        %2164 = vmax.xlane.f32.xlu0 %v2163
        %v2165 = vpop.xlane.xlu0 %2164
        %v2166 = vsel %vm1181, %v2122, -inf
        %2167 = vmax.xlane.f32.xlu0 %v2166
        %v2168 = vpop.xlane.xlu0 %2167
        %v2169 = vsel %vm1181, %v2141, -inf
        %2170 = vmax.xlane.f32.xlu0 %v2169
        %v2171 = vpop.xlane.xlu0 %2170
        %v2172 = vsel %vm1181, %v2160, -inf
        %2173 = vmax.xlane.f32.xlu0 %v2172
        %v2174 = vpop.xlane.xlu0 %2173
        %v2175 = vsub.f32 %v2103, %v2165
        %v2176 = vsub.f32 %v2122, %v2168
        %v2177 = vsub.f32 %v2141, %v2171
        %v2178 = vsub.f32 %v2160, %v2174
        %v2179 = vmul.f32 %v2175, 1.442695
        %v2180 = vpow.pop %v2179
        %v2181 = vmul.f32 %v2176, 1.442695
        %v2182 = vpow.pop %v2181
        %v2183 = vmul.f32 %v2177, 1.442695
        %v2184 = vpow.pop %v2183
        %v2185 = vmul.f32 %v2178, 1.442695
        %v2186 = vpow.pop %v2185
        %v2187 = vsel %vm1181, %v2180, 0.0
        %2188 = vadd.xlane.f32.xlu0 %v2187
        %v2189 = vpop.xlane.xlu0 %2188
        %v2190 = vsel %vm1181, %v2182, 0.0
        %2191 = vadd.xlane.f32.xlu0 %v2190
        %v2192 = vpop.xlane.xlu0 %2191
        %v2193 = vsel %vm1181, %v2184, 0.0
        %2194 = vadd.xlane.f32.xlu0 %v2193
        %v2195 = vpop.xlane.xlu0 %2194
        %v2196 = vsel %vm1181, %v2186, 0.0
        %2197 = vadd.xlane.f32.xlu0 %v2196
        %v2198 = vpop.xlane.xlu0 %2197
        %v2199 = vpack.c.bf16 %v2180, %v2180
        %v2200 = vpack.c.bf16 %v2182, %v2182
        %v2201 = vpack.c.bf16 %v2184, %v2184
        %v2202 = vpack.c.bf16 %v2186, %v2186
        %v2204 = vsel %vm1181, %v2199, 0
        %v2207 = vsel %vm1301, %v2083, 0
        %2209 = vmatpush.bf16.msra.mxu0 0
        %2210 = vmatpush.bf16.msra.mxu0 0
        %2211 = vmatpush.bf16.msra.mxu0 0
        %2212 = vmatpush.bf16.msra.mxu0 0
        %2213 = vmatpush.bf16.msra.mxu0 0
        %2214 = vmatpush.bf16.msra.mxu0 0
        %2215 = vmatpush.bf16.msra.mxu0 0
        %2216 = vmatpush.bf16.msra.mxu0 %v2207
        %2217 = vmatmul.bf16.gmra.mxu0 %v2204
        %v2218 = vpop.f32.mrf.mxu0
        %v2219 = vadd.f32 0.0, %v2218
        %v2220 = vpop.f32.mrf.mxu0
        %2221 = vdwg.mxu0
        %v2223 = vsel %vm1181, %v2200, 0
        %v2226 = vsel %vm1301, %v2084, 0
        %2228 = vmatpush.bf16.msra.mxu0 0
        %2229 = vmatpush.bf16.msra.mxu0 0
        %2230 = vmatpush.bf16.msra.mxu0 0
        %2231 = vmatpush.bf16.msra.mxu0 0
        %2232 = vmatpush.bf16.msra.mxu0 0
        %2233 = vmatpush.bf16.msra.mxu0 0
        %2234 = vmatpush.bf16.msra.mxu0 0
        %2235 = vmatpush.bf16.msra.mxu0 %v2226
        %2236 = vmatmul.bf16.gmra.mxu0 %v2223
        %v2237 = vpop.f32.mrf.mxu0
        %v2238 = vadd.f32 0.0, %v2237
        %v2239 = vpop.f32.mrf.mxu0
        %2240 = vdwg.mxu0
        %v2242 = vsel %vm1181, %v2201, 0
        %v2245 = vsel %vm1301, %v2085, 0
        %2247 = vmatpush.bf16.msra.mxu0 0
        %2248 = vmatpush.bf16.msra.mxu0 0
        %2249 = vmatpush.bf16.msra.mxu0 0
        %2250 = vmatpush.bf16.msra.mxu0 0
        %2251 = vmatpush.bf16.msra.mxu0 0
        %2252 = vmatpush.bf16.msra.mxu0 0
        %2253 = vmatpush.bf16.msra.mxu0 0
        %2254 = vmatpush.bf16.msra.mxu0 %v2245
        %2255 = vmatmul.bf16.gmra.mxu0 %v2242
        %v2256 = vpop.f32.mrf.mxu0
        %v2257 = vadd.f32 0.0, %v2256
        %v2258 = vpop.f32.mrf.mxu0
        %2259 = vdwg.mxu0
        %v2261 = vsel %vm1181, %v2202, 0
        %v2264 = vsel %vm1301, %v2086, 0
        %2266 = vmatpush.bf16.msra.mxu0 0
        %2267 = vmatpush.bf16.msra.mxu0 0
        %2268 = vmatpush.bf16.msra.mxu0 0
        %2269 = vmatpush.bf16.msra.mxu0 0
        %2270 = vmatpush.bf16.msra.mxu0 0
        %2271 = vmatpush.bf16.msra.mxu0 0
        %2272 = vmatpush.bf16.msra.mxu0 0
        %2273 = vmatpush.bf16.msra.mxu0 %v2264
        %2274 = vmatmul.bf16.gmra.mxu0 %v2261
        %v2275 = vpop.f32.mrf.mxu0
        %v2276 = vadd.f32 0.0, %v2275
        %v2277 = vpop.f32.mrf.mxu0
        %2278 = vdwg.mxu0
        %v2279 = vrcp.pop %v2189
        %v2280 = vmul.f32 %v2189, %v2279
        %v2281 = vsub.f32 1.0, %v2280
        %v2282 = vmul.f32 %v2279, %v2281
        %v2283 = vadd.f32 %v2279, %v2282
        %vm2284 = vweird.f32 %v2189
        %vm2285 = vweird.f32 %v2279
        %vm2286 = vmor %vm2284, %vm2285
        %v2287 = vsel %vm2286, %v2279, %v2283
        %v2288 = vand.u32 2147483647, %v2189
        %vm2289 = vcmp.eq.f32.partialorder %v2288, 8.507059e+37
        %v2290 = vand.u32 %v2189, 2147483648
        %v2291 = vor.u32 1.1754944e-38, %v2290
        %v2292 = vsel %vm2289, %v2291, %v2287
        %v2293 = vrcp.pop %v2192
        %v2294 = vmul.f32 %v2192, %v2293
        %v2295 = vsub.f32 1.0, %v2294
        %v2296 = vmul.f32 %v2293, %v2295
        %v2297 = vadd.f32 %v2293, %v2296
        %vm2298 = vweird.f32 %v2192
        %vm2299 = vweird.f32 %v2293
        %vm2300 = vmor %vm2298, %vm2299
        %v2301 = vsel %vm2300, %v2293, %v2297
        %v2302 = vand.u32 2147483647, %v2192
        %vm2303 = vcmp.eq.f32.partialorder %v2302, 8.507059e+37
        %v2304 = vand.u32 %v2192, 2147483648
        %v2305 = vor.u32 1.1754944e-38, %v2304
        %v2306 = vsel %vm2303, %v2305, %v2301
        %v2307 = vrcp.pop %v2195
        %v2308 = vmul.f32 %v2195, %v2307
        %v2309 = vsub.f32 1.0, %v2308
        %v2310 = vmul.f32 %v2307, %v2309
        %v2311 = vadd.f32 %v2307, %v2310
        %vm2312 = vweird.f32 %v2195
        %vm2313 = vweird.f32 %v2307
        %vm2314 = vmor %vm2312, %vm2313
        %v2315 = vsel %vm2314, %v2307, %v2311
        %v2316 = vand.u32 2147483647, %v2195
        %vm2317 = vcmp.eq.f32.partialorder %v2316, 8.507059e+37
        %v2318 = vand.u32 %v2195, 2147483648
        %v2319 = vor.u32 1.1754944e-38, %v2318
        %v2320 = vsel %vm2317, %v2319, %v2315
        %v2321 = vrcp.pop %v2198
        %v2322 = vmul.f32 %v2198, %v2321
        %v2323 = vsub.f32 1.0, %v2322
        %v2324 = vmul.f32 %v2321, %v2323
        %v2325 = vadd.f32 %v2321, %v2324
        %vm2326 = vweird.f32 %v2198
        %vm2327 = vweird.f32 %v2321
        %vm2328 = vmor %vm2326, %vm2327
        %v2329 = vsel %vm2328, %v2321, %v2325
        %v2330 = vand.u32 2147483647, %v2198
        %vm2331 = vcmp.eq.f32.partialorder %v2330, 8.507059e+37
        %v2332 = vand.u32 %v2198, 2147483648
        %v2333 = vor.u32 1.1754944e-38, %v2332
        %v2334 = vsel %vm2331, %v2333, %v2329
        %v2335 = vmul.f32 %v2219, %v2292
        %v2336 = vmul.f32 %v2238, %v2306
        %v2337 = vmul.f32 %v2257, %v2320
        %v2338 = vmul.f32 %v2276, %v2334
        %v2339 = vrot.slane %v2337, 4
        %v2340 = vsel %vm835, %v2339, %v2335
        %v2341 = vrot.slane %v2335, 4
        %v2342 = vsel %vm835, %v2337, %v2341
        %v2344 = vunpack.c.l.s4 1983009808
        %v2345 = vunpack.c.0.s8 %v2344
        %v2346 = vperm.slane %v2340, %v2345
        %v2348 = vunpack.c.l.s4 1983009808
        %v2349 = vunpack.c.0.s8 %v2348
        %v2350 = vperm.slane %v2342, %v2349
        %v2351 = vrot.slane %v2338, 4
        %v2352 = vsel %vm835, %v2351, %v2336
        %v2353 = vrot.slane %v2336, 4
        %v2354 = vsel %vm835, %v2338, %v2353
        %v2356 = vunpack.c.l.s4 1983009808
        %v2357 = vunpack.c.0.s8 %v2356
        %v2358 = vperm.slane %v2352, %v2357
        %v2360 = vunpack.c.l.s4 1983009808
        %v2361 = vunpack.c.0.s8 %v2360
        %v2362 = vperm.slane %v2354, %v2361
        %v2363 = vrot.slane %v2358, 4
        %v2364 = vsel %vm835, %v2363, %v2346
        %v2365 = vrot.slane %v2346, 4
        %v2366 = vsel %vm835, %v2358, %v2365
        %v2368 = vunpack.c.l.s4 1934713408
        %v2369 = vunpack.c.0.s8 %v2368
        %v2370 = vperm.slane %v2364, %v2369
        %v2372 = vunpack.c.l.s4 1934713408
        %v2373 = vunpack.c.0.s8 %v2372
        %v2374 = vperm.slane %v2366, %v2373
        %v2375 = vrot.slane %v2362, 4
        %v2376 = vsel %vm835, %v2375, %v2350
        %v2377 = vrot.slane %v2350, 4
        %v2378 = vsel %vm835, %v2362, %v2377
        %v2380 = vunpack.c.l.s4 1934713408
        %v2381 = vunpack.c.0.s8 %v2380
        %v2382 = vperm.slane %v2376, %v2381
        %v2384 = vunpack.c.l.s4 1934713408
        %v2385 = vunpack.c.0.s8 %v2384
        %v2386 = vperm.slane %v2378, %v2385
        %v2387 = vrot.slane %v2370, 4
        %v2388 = vsel %vm835, 0.0, %v2387
        %v2389 = vrot.slane %v2374, 4
        %v2390 = vsel %vm835, 0.0, %v2389
        %v2391 = vrot.slane %v2382, 4
        %v2392 = vsel %vm835, 0.0, %v2391
        %v2393 = vrot.slane %v2386, 4
        %v2394 = vsel %vm835, 0.0, %v2393
        %v2395 = vsel %vm835, %v2389, %v2370
        %v2397 = vunpack.c.l.s4 1983009808
        %v2398 = vunpack.c.0.s8 %v2397
        %v2399 = vperm.slane %v2395, %v2398
        %v2400 = vrot.slane %v2390, 4
        %v2401 = vsel %vm835, %v2400, %v2388
        %v2403 = vunpack.c.l.s4 1983009808
        %v2404 = vunpack.c.0.s8 %v2403
        %v2405 = vperm.slane %v2401, %v2404
        %v2406 = vsel %vm835, %v2393, %v2382
        %v2408 = vunpack.c.l.s4 1983009808
        %v2409 = vunpack.c.0.s8 %v2408
        %v2410 = vperm.slane %v2406, %v2409
        %v2411 = vrot.slane %v2394, 4
        %v2412 = vsel %vm835, %v2411, %v2392
        %v2414 = vunpack.c.l.s4 1983009808
        %v2415 = vunpack.c.0.s8 %v2414
        %v2416 = vperm.slane %v2412, %v2415
        %v2417 = vrot.slane %v2405, 4
        %v2418 = vsel %vm835, %v2417, %v2399
        %v2419 = vrot.slane %v2399, 4
        %v2420 = vsel %vm835, %v2405, %v2419
        %v2422 = vunpack.c.l.s4 1934713408
        %v2423 = vunpack.c.0.s8 %v2422
        %v2424 = vperm.slane %v2418, %v2423
        %v2426 = vunpack.c.l.s4 1934713408
        %v2427 = vunpack.c.0.s8 %v2426
        %v2428 = vperm.slane %v2420, %v2427
        %v2429 = vrot.slane %v2416, 4
        %v2430 = vsel %vm835, %v2429, %v2410
        %v2431 = vrot.slane %v2410, 4
        %v2432 = vsel %vm835, %v2416, %v2431
        %v2434 = vunpack.c.l.s4 1934713408
        %v2435 = vunpack.c.0.s8 %v2434
        %v2436 = vperm.slane %v2430, %v2435
        %v2438 = vunpack.c.l.s4 1934713408
        %v2439 = vunpack.c.0.s8 %v2438
        %v2440 = vperm.slane %v2432, %v2439
        %v2441 = vrot.slane %v2436, 4
        %v2442 = vsel %vm835, %v2441, %v2424
        %v2443 = vrot.slane %v2424, 4
        %v2444 = vsel %vm835, %v2436, %v2443
        %v2445 = vrot.slane %v2440, 4
        %v2446 = vsel %vm835, %v2445, %v2428
        %v2447 = vrot.slane %v2428, 4
        %v2448 = vsel %vm835, %v2440, %v2447
        %2450 = vrot.lane.b32.xlu0 %v2444, 8
        %v2451 = vpop.permute.xlu0 %2450
        %2454 = vrot.lane.b32.xlu0 %v2446, 16
        %v2455 = vpop.permute.xlu0 %2454
        %2458 = vrot.lane.b32.xlu0 %v2448, 24
        %v2459 = vpop.permute.xlu0 %2458
        %v2461 = vsel %vm1181, %v2442, %v2451
        %v2462 = vsel %vm1558, %v2461, %v2455
        %v2463 = vsel %vm1560, %v2462, %v2459
        %v2464 = vpack.c.bf16 %v2463, %v2463
        %v2465 = vld [vmem:[#allocation14] sm:$0xf]
        %v2466 = vld [vmem:[#allocation14 + $0x4] sm:$0xf]
        %v2467 = vld [vmem:[#allocation14 + $0x8] sm:$0xf]
        %v2468 = vld [vmem:[#allocation14 + $0xc] sm:$0xf]
        %v2469 = vld [vmem:[%s12] sm:$0x1]
        %v2471 = vperm.slane %v2469, 0
        %v2477 = vunpack.c.l.b16 %v2465
        %v2478 = vunpack.c.l.b16 %v2466
        %v2479 = vunpack.c.l.b16 %v2467
        %v2480 = vunpack.c.l.b16 %v2468
        %v2481 = vpack.c.b16 %v2478, %v2477
        %v2482 = vpack.c.b16 %v2480, %v2479
        %v2486 = vsel %vm783, %v2464, 0
        %2488 = vmatpush.bf16.msra.mxu0 0
        %2489 = vmatpush.bf16.msra.mxu0 0
        %2490 = vmatpush.bf16.msra.mxu0 0
        %2491 = vmatpush.bf16.msra.mxu0 0
        %2492 = vmatpush.bf16.msra.mxu0 0
        %2493 = vmatpush.bf16.msra.mxu0 0
        %2494 = vmatpush.bf16.msra.mxu0 %v2482
        %2495 = vmatpush.bf16.msra.mxu0 %v2481
        %2496 = vmatmul.bf16.gmra.mxu0 %v2486
        %v2497 = vpop.f32.mrf.mxu0
        %v2498 = vadd.f32 %v2471, %v2497
        %v2499 = vpop.f32.mrf.mxu0
        %2500 = vdwg.mxu0
        %v2501 = vadd.f32 %v1634, %v2498
        %v2502 = vld [vmem:[%s17 + $0x1] sm:$0x1]
        %v2503 = vld [vmem:[%s18 + $0x1] sm:$0x1]
        %v2504 = vsel %vm783, %v2501, 0.0
        %2505 = vadd.xlane.f32.xlu0 %v2504
        %v2506 = vpop.xlane.xlu0 %2505
        %v2507 = vmul.f32 %v2506, %v1611
        %v2508 = vsub.f32 %v2501, %v2507
        %v2509 = vmul.f32 %v2508, %v2508
        %v2510 = vsel %vm783, %v2509, 0.0
        %2511 = vadd.xlane.f32.xlu0 %v2510
        %v2512 = vpop.xlane.xlu0 %2511
        %v2513 = vmul.f32 %v2512, %v1611
        %v2514 = vadd.f32 %v2513, 1e-05
        %v2515 = vrsqrt.pop %v2514
        %v2516 = vmul.f32 %v2515, %v2514
        %v2517 = vmul.f32 %v2516, %v2515
        %v2518 = vmul.f32 0.5, %v2517
        %v2519 = vsub.f32 1.5, %v2518
        %v2520 = vmul.f32 %v2515, %v2519
        %vm2521 = vweird.f32 %v2514
        %vm2522 = vweird.f32 %v2515
        %vm2523 = vmor %vm2521, %vm2522
        %v2524 = vsel %vm2523, %v2515, %v2520
        %v2525 = vmul.f32 %v2508, %v2524
        %v2526 = vperm.slane %v2502, 0
        %v2527 = vmul.f32 %v2525, %v2526
        %v2528 = vperm.slane %v2503, 0
        %v2529 = vadd.f32 %v2527, %v2528
        %v2530 = vpack.c.bf16 %v2529, %v2529
        %v2531 = vld [vmem:[#allocation16] sm:$0xf]
        %v2532 = vld [vmem:[#allocation16 + $0x4] sm:$0xf]
        %v2533 = vld [vmem:[#allocation16 + $0x8] sm:$0xf]
        %v2534 = vld [vmem:[#allocation16 + $0xc] sm:$0xf]
        %v2535 = vld [vmem:[%s14] sm:$0x1]
        %v2537 = vperm.slane %v2535, 0
        %v2543 = vunpack.c.l.b16 %v2531
        %v2544 = vunpack.c.l.b16 %v2532
        %v2545 = vunpack.c.l.b16 %v2533
        %v2546 = vunpack.c.l.b16 %v2534
        %v2547 = vpack.c.b16 %v2544, %v2543
        %v2548 = vpack.c.b16 %v2546, %v2545
        %v2552 = vsel %vm783, %v2530, 0
        %2554 = vmatpush.bf16.msra.mxu0 0
        %2555 = vmatpush.bf16.msra.mxu0 0
        %2556 = vmatpush.bf16.msra.mxu0 0
        %2557 = vmatpush.bf16.msra.mxu0 0
        %2558 = vmatpush.bf16.msra.mxu0 0
        %2559 = vmatpush.bf16.msra.mxu0 0
        %2560 = vmatpush.bf16.msra.mxu0 %v2548
        %2561 = vmatpush.bf16.msra.mxu0 %v2547
        %2562 = vmatmul.bf16.gmra.mxu0 %v2552
        %v2563 = vpop.f32.mrf.mxu0
        %v2564 = vadd.f32 %v2537, %v2563
        %v2565 = vpop.f32.mrf.mxu0
        %2566 = vdwg.mxu0
        %v2567 = vmax.f32 %v2564, 0.0
        %v2568 = vpack.c.bf16 %v2567, %v2567
        %v2569 = vld [vmem:[%s15] sm:$0xf]
        %v2570 = vld [vmem:[%s15 + $0x4] sm:$0xf]
        %v2571 = vld [vmem:[%s15 + $0x8] sm:$0xf]
        %v2572 = vld [vmem:[%s15 + $0xc] sm:$0xf]
        %v2573 = vld [vmem:[%s15 + $0x10] sm:$0xf]
        %v2574 = vld [vmem:[%s15 + $0x14] sm:$0xf]
        %v2575 = vld [vmem:[%s15 + $0x18] sm:$0xf]
        %v2576 = vld [vmem:[%s15 + $0x1c] sm:$0xf]
        %v2577 = vld [vmem:[%s16] sm:$0x1]
        %v2579 = vperm.slane %v2577, 0
        %v2589 = vunpack.c.l.b16 %v2569
        %v2590 = vunpack.c.l.b16 %v2570
        %v2591 = vunpack.c.l.b16 %v2571
        %v2592 = vunpack.c.l.b16 %v2572
        %v2593 = vunpack.c.l.b16 %v2573
        %v2594 = vunpack.c.l.b16 %v2574
        %v2595 = vunpack.c.l.b16 %v2575
        %v2596 = vunpack.c.l.b16 %v2576
        %v2597 = vpack.c.b16 %v2590, %v2589
        %v2598 = vpack.c.b16 %v2592, %v2591
        %v2599 = vpack.c.b16 %v2594, %v2593
        %v2600 = vpack.c.b16 %v2596, %v2595
        %vm2605 = vcmask 523264
        %v2607 = vsel %vm2605, %v2568, 0
        %2609 = vmatpush.bf16.msra.mxu0 0
        %2610 = vmatpush.bf16.msra.mxu0 0
        %2611 = vmatpush.bf16.msra.mxu0 0
        %2612 = vmatpush.bf16.msra.mxu0 0
        %2613 = vmatpush.bf16.msra.mxu0 %v2600
        %2614 = vmatpush.bf16.msra.mxu0 %v2599
        %2615 = vmatpush.bf16.msra.mxu0 %v2598
        %2616 = vmatpush.bf16.msra.mxu0 %v2597
        %2617 = vmatmul.bf16.gmra.mxu0 %v2607
        %v2618 = vpop.f32.mrf.mxu0
        %v2619 = vadd.f32 %v2579, %v2618
        %v2620 = vpop.f32.mrf.mxu0
        %2621 = vdwg.mxu0
        %v2622 = vadd.f32 %v2529, %v2619
        %v2623 = vld [vmem:[%s17 + $0x2] sm:$0x1]
        %v2624 = vld [vmem:[%s18 + $0x2] sm:$0x1]
        %v2625 = vsel %vm783, %v2622, 0.0
        %2626 = vadd.xlane.f32.xlu0 %v2625
        %v2627 = vpop.xlane.xlu0 %2626
        %v2628 = vmul.f32 %v2627, %v1611
        %v2629 = vsub.f32 %v2622, %v2628
        %v2630 = vmul.f32 %v2629, %v2629
        %v2631 = vsel %vm783, %v2630, 0.0
        %2632 = vadd.xlane.f32.xlu0 %v2631
        %v2633 = vpop.xlane.xlu0 %2632
        %v2634 = vmul.f32 %v2633, %v1611
        %v2635 = vadd.f32 %v2634, 1e-05
        %v2636 = vrsqrt.pop %v2635
        %v2637 = vmul.f32 %v2636, %v2635
        %v2638 = vmul.f32 %v2637, %v2636
        %v2639 = vmul.f32 0.5, %v2638
        %v2640 = vsub.f32 1.5, %v2639
        %v2641 = vmul.f32 %v2636, %v2640
        %vm2642 = vweird.f32 %v2635
        %vm2643 = vweird.f32 %v2636
        %vm2644 = vmor %vm2642, %vm2643
        %v2645 = vsel %vm2644, %v2636, %v2641
        %v2646 = vmul.f32 %v2629, %v2645
        %v2647 = vperm.slane %v2623, 0
        %v2648 = vmul.f32 %v2646, %v2647
        %v2649 = vperm.slane %v2624, 0
        %v2650 = vadd.f32 %v2648, %v2649
        %2651 = vst.msk [vmem:[%s747] sm:$0xff] %vm783, %v2650
        %s2652 = sand.u32 %s455, 1
        %s2653 = scalar_lea.sflag [#allocation4], %s2652
        %s2654 = sand.u32 %s455, 1
        %s2655 = smul.addr %s2654, 8
        %s2656 = scalar_lea.vmem [#allocation17], %s2655
        // Predicated region
        $region133: #{tpu_custom_call.1} parent=95 // pred_check
          %p2657 = pneg %p465
        $region134: #{tpu_custom_call.1} parent=95 // pred_check_branch
          %2659 = sbr.rel (%p2657) target = $region136
        $region135: #{tpu_custom_call.1} parent=95 // pred_region
          %2661 = vsyncadd %s2653, 0
          %s2662 = smul.addr %s38, 8
          %s2663 = scalar_lea.hbm %s19, %s2662
          %s2665 = sshll.u32 %s2656, 4
          %s2666 = int_to_ptr.vmem [resolvable:$true] %s2665
          %s2667 = sshll.u32 %s2663, 4
          %s2668 = int_to_ptr.hbm [resolvable:$true] %s2667
          %2670 = dma.vmem_to_hbm [thread:$0]  %s2666, 128, %s2668, %s2653
        $region136: #{tpu_custom_call.1} parent=95 // pred_fallthru
          _
      $region96: #{tpu_custom_call.1} parent=5 // pred_fallthru
        _
      %p2671 = scmp.le.s32.totalorder 2, %s33
      // Predicated region
      $region137: #{tpu_custom_call.1} parent=5 // pred_check
        %p2672 = pneg %p2671
      $region138: #{tpu_custom_call.1} parent=5 // pred_check_branch
        %2674 = sbr.rel (%p2672) target = $region140
      $region139: #{tpu_custom_call.1} parent=5 // pred_region
        %s2675 = ssub.s32 %s33, 2
        // Predicated region
        $region141: #{tpu_custom_call.1} parent=139 // pred_check
          %p2676 = pneg %p471
        $region142: #{tpu_custom_call.1} parent=139 // pred_check_branch
          %2678 = sbr.rel (%p2676) target = $region144
        $region143: #{tpu_custom_call.1} parent=139 // pred_region
          %s2679 = sand.u32 %s456, 1
          %s2680 = scalar_lea.sflag [#allocation4], %s2679
          %s2681 = sand.u32 %s456, 1
          %s2682 = smul.addr %s2681, 8
          %s2683 = scalar_lea.vmem [#allocation17], %s2682
          %2685 = dma.done %s2680, 128
        $region144: #{tpu_custom_call.1} parent=139 // pred_fallthru
          _
      $region140: #{tpu_custom_call.1} parent=5 // pred_fallthru
        _
    $region6: #{tpu_custom_call.1} parent=1 // loop_footer
      %s37 = sadd.s32 1, %s33
    $region7: #{tpu_custom_call.1} parent=1 // loop_footer_branch
      %32 = sbr.rel target = $region3
    $region8: #{tpu_custom_call.1} parent=1 // loop_exit
      _
    %2686 = vsyncpa [#allocation3], 1
    %s2687 = scalar_lea.sflag [#allocation3], 1
    %2688 = vsyncpa %s2687, 1
    %2689 = vsyncpa [#allocation6], 1
    %2690 = vsyncpa [#allocation9], 1
    %2691 = vsyncpa [#allocation12], 1
    %2692 = vsyncpa [#allocation15], 1
    %2693 = vsyncpa [#allocation4], 1
    %s2694 = scalar_lea.sflag [#allocation4], 1
    %2695 = vsyncpa %s2694, 1

</llo_original>
